<compile_context>
chip_gen: v7x
topology: tpu7x:2x2x1
jax: 0.10.0
libtpu: 0.0.40
codegen_flags: <defaults>
</compile_context>

<pallas_src>
import functools
import math

import jax
import jax.numpy as jnp
from jax.experimental import pallas as pl
from jax.experimental.pallas import tpu as pltpu

LANES = 128        # TPU lane width: hidden2 / action dims padded to this
H1 = 128           # fc1 output width (already lane-dense)
H2 = 64            # fc2 output width (padded to LANES inside the packed slab)
NEG_BIAS = -1e30   # bias for padded action lanes -> exp() underflows to exactly 0


def _round_up(n, m):
    return (n + m - 1) // m * m


def init_linear_params(key, in_dim, out_dim):
    """PyTorch-style init U(-1/sqrt(fan_in), 1/sqrt(fan_in)); W in (in, out) layout."""
    kw, kb = jax.random.split(key)
    bound = 1.0 / math.sqrt(in_dim)
    w = jax.random.uniform(kw, (in_dim, out_dim), jnp.float32, -bound, bound)
    b = jax.random.uniform(kb, (out_dim,), jnp.float32, -bound, bound)
    return w, b


def pack_params(w1, b1, w2, b2, w3, b3, *, param_dtype=jnp.float32):
    """Pack all 6 params into a single lane-dense (rows, 128) slab.

    Row layout (all offsets multiples of 8 so in-kernel slices stay tile-aligned):
      [w1: sd_pad rows][b1: 8 rows][w2: 128 rows][b2: 8 rows][w3: 128 rows][b3: 8 rows]
    hidden2 / action lanes are zero-padded to 128; padded action lanes get a -1e30
    bias so softmax assigns them exactly-0 probability.  param_dtype=bfloat16 halves
    the weight DMA on v6e/v7x (accumulation stays f32 inside the kernel).
    """
    state_dim = w1.shape[0]
    action_dim = w3.shape[1]
    sd_pad = _round_up(state_dim, 8)

    offs = {
        "w1": 0,
        "b1": sd_pad,
        "w2": sd_pad + 8,
        "b2": sd_pad + 8 + H1,
        "w3": sd_pad + 16 + H1,
        "b3": sd_pad + 16 + H1 + LANES,
    }
    total_rows = sd_pad + 24 + H1 + LANES

    slab = jnp.zeros((total_rows, LANES), jnp.float32)
    slab = slab.at[offs["w1"]:offs["w1"] + state_dim, :H1].set(w1)
    slab = slab.at[offs["b1"], :H1].set(b1)
    slab = slab.at[offs["w2"]:offs["w2"] + H1, :H2].set(w2)
    slab = slab.at[offs["b2"], :H2].set(b2)
    slab = slab.at[offs["w3"]:offs["w3"] + H2, :action_dim].set(w3)
    slab = slab.at[offs["b3"], :].set(NEG_BIAS)
    slab = slab.at[offs["b3"], :action_dim].set(b3)
    return slab.astype(param_dtype), offs, sd_pad


def _policy_mlp_kernel(x_ref, p_ref, out_ref, *, sd_pad, offs):
    """One batch tile: 3 matmuls + ReLUs + numerically-stable softmax, all in VMEM."""
    cdt = p_ref.dtype                                 # compute/storage dtype (f32 or bf16)
    x = x_ref[...]                                    # (TILE_B, sd_pad)

    w1 = p_ref[pl.ds(offs["w1"], sd_pad), :]          # (sd_pad, 128)
    b1 = p_ref[pl.ds(offs["b1"], 1), :]               # (1, 128)
    w2 = p_ref[pl.ds(offs["w2"], H1), :]              # (128, 128)  (cols >= H2 are 0)
    b2 = p_ref[pl.ds(offs["b2"], 1), :]
    w3 = p_ref[pl.ds(offs["w3"], LANES), :]           # (128, 128)  (rows >= H2, cols >= A are 0)
    b3 = p_ref[pl.ds(offs["b3"], 1), :]               # padded action lanes = -1e30

    # f32 accumulation on the MXU regardless of storage dtype.
    h1 = jnp.maximum(jnp.dot(x, w1, preferred_element_type=jnp.float32) + b1, 0.0)
    h2 = jnp.maximum(
        jnp.dot(h1.astype(cdt), w2, preferred_element_type=jnp.float32) + b2, 0.0)
    logits = jnp.dot(h2.astype(cdt), w3, preferred_element_type=jnp.float32) + b3

    m = jnp.max(logits, axis=1, keepdims=True)
    e = jnp.exp(logits - m)                           # padded lanes -> exp(-1e30) = 0
    denom = jnp.sum(e, axis=1, keepdims=True)         # >= 1, so approx reciprocal is safe
    out_ref[...] = (e * pl.reciprocal(denom, approx=True)).astype(out_ref.dtype)


def _choose_tile_b(batch):
    """Single grid step for small/medium batches; 2048-row tiles for large batches
    (the 'parallel' batch axis then lets v7x's two TensorCores split them)."""
    b_pad8 = _round_up(batch, 8)
    if b_pad8 <= 2048:
        return b_pad8
    return 2048


def policy_network_forward(x, slab, offs, sd_pad, action_dim, *,
                           tile_b=None, return_padded=False, out_dtype=jnp.float32):
    """Batched forward: one pallas_call, grid over batch tiles, params VMEM-resident.

    If return_padded=True the padded (b_pad, 128) lane-dense slab is returned as-is
    (padded lanes carry exactly-0 probability; padded rows must be ignored by the
    consumer) so no extra XLA slice/copy kernel is launched here.
    """
    batch, state_dim = x.shape
    compute_dtype = slab.dtype

    if tile_b is None:
        tile_b = _choose_tile_b(batch)
    else:
        tile_b = max(8, _round_up(min(tile_b, _round_up(batch, 8)), 8))
    b_pad = _round_up(batch, tile_b)

    # Fast path: no zero-fill / dynamic-update-slice pre-pass when no padding is needed.
    if batch == b_pad and state_dim == sd_pad and x.dtype == compute_dtype:
        x_in = x
    else:
        x_in = (jnp.zeros((b_pad, sd_pad), compute_dtype)
                .at[:batch, :state_dim].set(x.astype(compute_dtype)))

    n_rows = slab.shape[0]
    grid = (b_pad // tile_b,)
    kernel = functools.partial(_policy_mlp_kernel, sd_pad=sd_pad, offs=offs)

    flops = 2 * b_pad * (sd_pad * H1 + H1 * LANES + LANES * LANES)
    transcendentals = b_pad * LANES + b_pad
    bytes_accessed = (x_in.size * x_in.dtype.itemsize
                      + slab.size * slab.dtype.itemsize
                      + b_pad * LANES * jnp.dtype(out_dtype).itemsize)

    out = pl.pallas_call(
        kernel,
        out_shape=jax.ShapeDtypeStruct((b_pad, LANES), out_dtype),
        grid=grid,
        in_specs=[
            pl.BlockSpec((tile_b, sd_pad), lambda i: (i, 0)),
            # Constant index_map: single DMA of the packed params, resident in VMEM
            # across every batch-grid iteration.
            pl.BlockSpec((n_rows, LANES), lambda i: (0, 0)),
        ],
        out_specs=pl.BlockSpec((tile_b, LANES), lambda i: (i, 0)),
        compiler_params=pltpu.CompilerParams(
            dimension_semantics=("parallel",)),
        cost_estimate=pl.CostEstimate(
            flops=flops,
            transcendentals=transcendentals,
            bytes_accessed=bytes_accessed),
    )(x_in, slab)

    if return_padded:
        return out
    return out[:batch, :action_dim]


if __name__ == "__main__":
    state_dim = 32
    action_dim = 8
    batch = 512   # batched RL inference

    root = jax.random.PRNGKey(0)
    k_x, k1, k2, k3 = jax.random.split(root, 4)

    x = jax.random.normal(k_x, (batch, state_dim), jnp.float32)

    w1, b1 = init_linear_params(k1, state_dim, H1)
    w2, b2 = init_linear_params(k2, H1, H2)
    w3, b3 = init_linear_params(k3, H2, action_dim)

    # Pure-JAX reference (same math as the PyTorch module's forward).
    h1 = jnp.maximum(x @ w1 + b1, 0.0)
    h2 = jnp.maximum(h1 @ w2 + b2, 0.0)
    ref = jax.nn.softmax(h2 @ w3 + b3, axis=1)

    # --- f32 path: exact parity with the module; fast input path (no pad copy),
    # --- padded output returned directly, consumer does the (cheap) slice.
    slab, offs, sd_pad = pack_params(w1, b1, w2, b2, w3, b3)
    out_pad = policy_network_forward(x, slab, offs, sd_pad, action_dim,
                                     return_padded=True)
    out_pad = jax.block_until_ready(out_pad)
    assert out_pad.shape == (batch, LANES)
    out = out_pad[:batch, :action_dim]            # consumer-side slice
    assert jnp.allclose(out, ref, atol=1e-3, rtol=1e-3)
    assert jnp.allclose(jnp.sum(out, axis=1), 1.0, atol=1e-3)
    # padded action lanes carry ~0 probability
    assert float(jnp.max(jnp.abs(out_pad[:, action_dim:]))) < 1e-6

    # --- bf16 slab + bf16 activations (v6e/v7x HBM/MXU-friendly), f32 accumulation.
    slab_bf, offs_bf, sd_pad_bf = pack_params(w1, b1, w2, b2, w3, b3,
                                              param_dtype=jnp.bfloat16)
    out_bf = policy_network_forward(x.astype(jnp.bfloat16), slab_bf, offs_bf,
                                    sd_pad_bf, action_dim)
    out_bf = jax.block_until_ready(out_bf)
    assert jnp.allclose(out_bf, ref, atol=5e-2, rtol=5e-2)

    # --- ragged batch exercises the padded (non-fast) input path.
    out_r = policy_network_forward(x[:100], slab, offs, sd_pad, action_dim)
    out_r = jax.block_until_ready(out_r)
    assert out_r.shape == (100, action_dim)
    assert jnp.allclose(out_r, ref[:100], atol=1e-3, rtol=1e-3)

    print("KERNEL_OK")
</pallas_src>

<mosaic_0001>
module attributes {stable_mosaic.version = 11 : i64} {
  func.func @_policy_mlp_kernel(%arg0: i32, %arg1: memref<512x32xf32, #tpu.memory_space<vmem>>, %arg2: memref<312x128xf32, #tpu.memory_space<vmem>>, %arg3: memref<512x128xf32, #tpu.memory_space<vmem>>) attributes {dimension_semantics = [#tpu.dimension_semantics<parallel>], iteration_bounds = array<i64: 1>, scalar_prefetch = 0 : i64, scratch_operands = 0 : i64, tpu.core_type = #tpu.core_type<tc>, window_params = [{transform_indices = @transform_0, window_bounds = array<i64: 512, 32>}, {pipeline_mode = #tpu.pipeline_mode<synchronous>, transform_indices = @transform_1, window_bounds = array<i64: 312, 128>}, {transform_indices = @transform_2, window_bounds = array<i64: 512, 128>}]} {
    %c0 = arith.constant 0 : index
    %c0_0 = arith.constant 0 : index
    %0 = vector.load %arg1[%c0, %c0_0] : memref<512x32xf32, #tpu.memory_space<vmem>>, vector<512x32xf32>
    %c0_1 = arith.constant 0 : index
    %c0_2 = arith.constant 0 : index
    %1 = vector.load %arg2[%c0_1, %c0_2] : memref<312x128xf32, #tpu.memory_space<vmem>>, vector<32x128xf32>
    %c32 = arith.constant 32 : index
    %c0_3 = arith.constant 0 : index
    %2 = vector.load %arg2[%c32, %c0_3] : memref<312x128xf32, #tpu.memory_space<vmem>>, vector<1x128xf32>
    %c40 = arith.constant 40 : index
    %c0_4 = arith.constant 0 : index
    %3 = vector.load %arg2[%c40, %c0_4] : memref<312x128xf32, #tpu.memory_space<vmem>>, vector<128x128xf32>
    %c168 = arith.constant 168 : index
    %c0_5 = arith.constant 0 : index
    %4 = vector.load %arg2[%c168, %c0_5] : memref<312x128xf32, #tpu.memory_space<vmem>>, vector<1x128xf32>
    %c176 = arith.constant 176 : index
    %c0_6 = arith.constant 0 : index
    %5 = vector.load %arg2[%c176, %c0_6] : memref<312x128xf32, #tpu.memory_space<vmem>>, vector<128x128xf32>
    %c304 = arith.constant 304 : index
    %c0_7 = arith.constant 0 : index
    %6 = vector.load %arg2[%c304, %c0_7] : memref<312x128xf32, #tpu.memory_space<vmem>>, vector<1x128xf32>
    %cst = arith.constant dense<0.000000e+00> : vector<512x128xf32>
    %7 = tpu.matmul %0, %1, %cst {dimension_numbers = #tpu.dot_dimension_numbers<[1], [0], [0], [1], [0, 0, 1, 1], [], []>} : vector<512x32xf32>, vector<32x128xf32>, vector<512x128xf32> -> vector<512x128xf32>
    %8 = vector.broadcast %2 : vector<1x128xf32> to vector<512x128xf32>
    %9 = arith.addf %7, %8 : vector<512x128xf32>
    %cst_8 = arith.constant 0.000000e+00 : f32
    %10 = vector.broadcast %cst_8 : f32 to vector<512x128xf32>
    %11 = arith.maximumf %9, %10 : vector<512x128xf32>
    %cst_9 = arith.constant dense<0.000000e+00> : vector<512x128xf32>
    %12 = tpu.matmul %11, %3, %cst_9 {dimension_numbers = #tpu.dot_dimension_numbers<[1], [0], [0], [1], [0, 0, 1, 1], [], []>} : vector<512x128xf32>, vector<128x128xf32>, vector<512x128xf32> -> vector<512x128xf32>
    %13 = vector.broadcast %4 : vector<1x128xf32> to vector<512x128xf32>
    %14 = arith.addf %12, %13 : vector<512x128xf32>
    %cst_10 = arith.constant 0.000000e+00 : f32
    %15 = vector.broadcast %cst_10 : f32 to vector<512x128xf32>
    %16 = arith.maximumf %14, %15 : vector<512x128xf32>
    %cst_11 = arith.constant dense<0.000000e+00> : vector<512x128xf32>
    %17 = tpu.matmul %16, %5, %cst_11 {dimension_numbers = #tpu.dot_dimension_numbers<[1], [0], [0], [1], [0, 0, 1, 1], [], []>} : vector<512x128xf32>, vector<128x128xf32>, vector<512x128xf32> -> vector<512x128xf32>
    %18 = vector.broadcast %6 : vector<1x128xf32> to vector<512x128xf32>
    %19 = arith.addf %17, %18 : vector<512x128xf32>
    %cst_12 = arith.constant dense<0xFF800000> : vector<512xf32>
    %20 = vector.multi_reduction <maximumf>, %19, %cst_12 [1] : vector<512x128xf32> to vector<512xf32>
    %21 = vector.shape_cast %20 : vector<512xf32> to vector<512x1xf32>
    %22 = vector.broadcast %21 : vector<512x1xf32> to vector<512x128xf32>
    %23 = arith.subf %19, %22 : vector<512x128xf32>
    %24 = math.exp %23 : vector<512x128xf32>
    %cst_13 = arith.constant dense<0.000000e+00> : vector<512xf32>
    %25 = vector.multi_reduction <add>, %24, %cst_13 [1] : vector<512x128xf32> to vector<512xf32>
    %26 = vector.shape_cast %25 : vector<512xf32> to vector<512x1xf32>
    %27 = tpu.reciprocal %26 {approx = true} : vector<512x1xf32> -> vector<512x1xf32>
    %28 = vector.broadcast %27 : vector<512x1xf32> to vector<512x128xf32>
    %29 = arith.mulf %24, %28 : vector<512x128xf32>
    %c0_14 = arith.constant 0 : index
    %c0_15 = arith.constant 0 : index
    %30 = vector.load %arg3[%c0_14, %c0_15] : memref<512x128xf32, #tpu.memory_space<vmem>>, vector<512x128xf32>
    tpu.vector_store %arg3[%c0_14, %c0_15], %29 {strides = array<i32>} : memref<512x128xf32, #tpu.memory_space<vmem>>, vector<512x128xf32>,
    return
  }
  func.func @transform_0(%arg0: i32) -> (i32, i32) {
    %c0_i32 = arith.constant 0 : i32
    %c0_i32_0 = arith.constant 0 : i32
    return %arg0, %c0_i32 : i32, i32
  }
  func.func @transform_1(%arg0: i32) -> (i32, i32) {
    %c0_i32 = arith.constant 0 : i32
    %c0_i32_0 = arith.constant 0 : i32
    %c0_i32_1 = arith.constant 0 : i32
    return %c0_i32, %c0_i32_0 : i32, i32
  }
  func.func @transform_2(%arg0: i32) -> (i32, i32) {
    %c0_i32 = arith.constant 0 : i32
    %c0_i32_0 = arith.constant 0 : i32
    return %arg0, %c0_i32 : i32, i32
  }
}

</mosaic_0001>

<llo_original>
// kernel: tpu_custom_call.1
$region0: #{tpu_custom_call.1}
  #allocation0 [shape = 'u32[]', space=smem, size = 0x4, offset = 0x4, fixed_abs, tag = 'smem constant byte address 0x4 - core index']
  #allocation1 [shape = 'u32[144,128]{1,0:T(1,128)}', space=vmem, size = 0x12000, scoped, tag = 'internal scratch']
  %s0 = inlined_call_operand.vmem [shape: f32[512,32], index: 0, kind: input, shape index: {}]
  %s1 = inlined_call_operand.vmem [shape: f32[312,128], index: 1, kind: input, shape index: {}]
  %s2 = inlined_call_operand.hbm [shape: f32[512,128], index: 2, kind: output, shape index: {}]
  %s3 = sld [smem:[#allocation0]]
  $region18: #{tpu_custom_call.1} parent=0
    _
  %s5 = ssub.s32 1, %s3
  %s6 = scalar_select 0, %s5, %s3
  $region1: #{tpu_custom_call.1} parent=0
    #allocation2 [shape = 'u8[262144]{0}', space=vmem, size = 0x40000, scoped, tag = 'output window, operand 0, single buffered']
    #allocation3 [shape = 's32[1]{0}', space=sflag, size = 0x4, scoped, tag = 'scoped memory for tpu_custom_call.1']
    %7 = vsyncpa [#allocation3], 0
    // Predicated region
    $region2: #{tpu_custom_call.1} parent=1 // pred_check
      _
    $region3: #{tpu_custom_call.1} parent=1 // pred_check_branch
      %9 = sbr.rel (0) target = $region5
    $region4: #{tpu_custom_call.1} parent=1 // pred_region
      _
    $region5: #{tpu_custom_call.1} parent=1 // pred_fallthru
      _
    // Predicated region
    $region6: #{tpu_custom_call.1} parent=1 // pred_check
      _
    $region7: #{tpu_custom_call.1} parent=1 // pred_check_branch
      %11 = sbr.rel (0) target = $region9
    $region8: #{tpu_custom_call.1} parent=1 // pred_region
      _
    $region9: #{tpu_custom_call.1} parent=1 // pred_fallthru
      _
    %v12 = vld [vmem:[%s0] sm:$0xff]
    %v13 = vld [vmem:[%s0 + $0x8] sm:$0xff]
    %v14 = vld [vmem:[%s0 + $0x10] sm:$0xff]
    %v15 = vld [vmem:[%s0 + $0x18] sm:$0xff]
    %v16 = vld [vmem:[%s0 + $0x20] sm:$0xff]
    %v17 = vld [vmem:[%s0 + $0x28] sm:$0xff]
    %v18 = vld [vmem:[%s0 + $0x30] sm:$0xff]
    %v19 = vld [vmem:[%s0 + $0x38] sm:$0xff]
    %v20 = vld [vmem:[%s0 + $0x40] sm:$0xff]
    %v21 = vld [vmem:[%s0 + $0x48] sm:$0xff]
    %v22 = vld [vmem:[%s0 + $0x50] sm:$0xff]
    %v23 = vld [vmem:[%s0 + $0x58] sm:$0xff]
    %v24 = vld [vmem:[%s0 + $0x60] sm:$0xff]
    %v25 = vld [vmem:[%s0 + $0x68] sm:$0xff]
    %v26 = vld [vmem:[%s0 + $0x70] sm:$0xff]
    %v27 = vld [vmem:[%s0 + $0x78] sm:$0xff]
    %v28 = vld [vmem:[%s0 + $0x80] sm:$0xff]
    %v29 = vld [vmem:[%s0 + $0x88] sm:$0xff]
    %v30 = vld [vmem:[%s0 + $0x90] sm:$0xff]
    %v31 = vld [vmem:[%s0 + $0x98] sm:$0xff]
    %v32 = vld [vmem:[%s0 + $0xa0] sm:$0xff]
    %v33 = vld [vmem:[%s0 + $0xa8] sm:$0xff]
    %v34 = vld [vmem:[%s0 + $0xb0] sm:$0xff]
    %v35 = vld [vmem:[%s0 + $0xb8] sm:$0xff]
    %v36 = vld [vmem:[%s0 + $0xc0] sm:$0xff]
    %v37 = vld [vmem:[%s0 + $0xc8] sm:$0xff]
    %v38 = vld [vmem:[%s0 + $0xd0] sm:$0xff]
    %v39 = vld [vmem:[%s0 + $0xd8] sm:$0xff]
    %v40 = vld [vmem:[%s0 + $0xe0] sm:$0xff]
    %v41 = vld [vmem:[%s0 + $0xe8] sm:$0xff]
    %v42 = vld [vmem:[%s0 + $0xf0] sm:$0xff]
    %v43 = vld [vmem:[%s0 + $0xf8] sm:$0xff]
    %v44 = vld [vmem:[%s0 + $0x100] sm:$0xff]
    %v45 = vld [vmem:[%s0 + $0x108] sm:$0xff]
    %v46 = vld [vmem:[%s0 + $0x110] sm:$0xff]
    %v47 = vld [vmem:[%s0 + $0x118] sm:$0xff]
    %v48 = vld [vmem:[%s0 + $0x120] sm:$0xff]
    %v49 = vld [vmem:[%s0 + $0x128] sm:$0xff]
    %v50 = vld [vmem:[%s0 + $0x130] sm:$0xff]
    %v51 = vld [vmem:[%s0 + $0x138] sm:$0xff]
    %v52 = vld [vmem:[%s0 + $0x140] sm:$0xff]
    %v53 = vld [vmem:[%s0 + $0x148] sm:$0xff]
    %v54 = vld [vmem:[%s0 + $0x150] sm:$0xff]
    %v55 = vld [vmem:[%s0 + $0x158] sm:$0xff]
    %v56 = vld [vmem:[%s0 + $0x160] sm:$0xff]
    %v57 = vld [vmem:[%s0 + $0x168] sm:$0xff]
    %v58 = vld [vmem:[%s0 + $0x170] sm:$0xff]
    %v59 = vld [vmem:[%s0 + $0x178] sm:$0xff]
    %v60 = vld [vmem:[%s0 + $0x180] sm:$0xff]
    %v61 = vld [vmem:[%s0 + $0x188] sm:$0xff]
    %v62 = vld [vmem:[%s0 + $0x190] sm:$0xff]
    %v63 = vld [vmem:[%s0 + $0x198] sm:$0xff]
    %v64 = vld [vmem:[%s0 + $0x1a0] sm:$0xff]
    %v65 = vld [vmem:[%s0 + $0x1a8] sm:$0xff]
    %v66 = vld [vmem:[%s0 + $0x1b0] sm:$0xff]
    %v67 = vld [vmem:[%s0 + $0x1b8] sm:$0xff]
    %v68 = vld [vmem:[%s0 + $0x1c0] sm:$0xff]
    %v69 = vld [vmem:[%s0 + $0x1c8] sm:$0xff]
    %v70 = vld [vmem:[%s0 + $0x1d0] sm:$0xff]
    %v71 = vld [vmem:[%s0 + $0x1d8] sm:$0xff]
    %v72 = vld [vmem:[%s0 + $0x1e0] sm:$0xff]
    %v73 = vld [vmem:[%s0 + $0x1e8] sm:$0xff]
    %v74 = vld [vmem:[%s0 + $0x1f0] sm:$0xff]
    %v75 = vld [vmem:[%s0 + $0x1f8] sm:$0xff]
    %v76 = vld [vmem:[%s1] sm:$0xff]
    %v77 = vld [vmem:[%s1 + $0x8] sm:$0xff]
    %v78 = vld [vmem:[%s1 + $0x10] sm:$0xff]
    %v79 = vld [vmem:[%s1 + $0x18] sm:$0xff]
    %v80 = vld [vmem:[%s1 + $0x20] sm:$0x1]
    %v81 = vld [vmem:[%s1 + $0x28] sm:$0xff]
    %v82 = vld [vmem:[%s1 + $0x30] sm:$0xff]
    %v83 = vld [vmem:[%s1 + $0x38] sm:$0xff]
    %v84 = vld [vmem:[%s1 + $0x40] sm:$0xff]
    %v85 = vld [vmem:[%s1 + $0x48] sm:$0xff]
    %v86 = vld [vmem:[%s1 + $0x50] sm:$0xff]
    %v87 = vld [vmem:[%s1 + $0x58] sm:$0xff]
    %v88 = vld [vmem:[%s1 + $0x60] sm:$0xff]
    %v89 = vld [vmem:[%s1 + $0x68] sm:$0xff]
    %v90 = vld [vmem:[%s1 + $0x70] sm:$0xff]
    %v91 = vld [vmem:[%s1 + $0x78] sm:$0xff]
    %v92 = vld [vmem:[%s1 + $0x80] sm:$0xff]
    %v93 = vld [vmem:[%s1 + $0x88] sm:$0xff]
    %v94 = vld [vmem:[%s1 + $0x90] sm:$0xff]
    %v95 = vld [vmem:[%s1 + $0x98] sm:$0xff]
    %v96 = vld [vmem:[%s1 + $0xa0] sm:$0xff]
    %v97 = vld [vmem:[%s1 + $0xa8] sm:$0x1]
    %v98 = vld [vmem:[%s1 + $0xb0] sm:$0xff]
    %v99 = vld [vmem:[%s1 + $0xb8] sm:$0xff]
    %v100 = vld [vmem:[%s1 + $0xc0] sm:$0xff]
    %v101 = vld [vmem:[%s1 + $0xc8] sm:$0xff]
    %v102 = vld [vmem:[%s1 + $0xd0] sm:$0xff]
    %v103 = vld [vmem:[%s1 + $0xd8] sm:$0xff]
    %v104 = vld [vmem:[%s1 + $0xe0] sm:$0xff]
    %v105 = vld [vmem:[%s1 + $0xe8] sm:$0xff]
    %v106 = vld [vmem:[%s1 + $0xf0] sm:$0xff]
    %v107 = vld [vmem:[%s1 + $0xf8] sm:$0xff]
    %v108 = vld [vmem:[%s1 + $0x100] sm:$0xff]
    %v109 = vld [vmem:[%s1 + $0x108] sm:$0xff]
    %v110 = vld [vmem:[%s1 + $0x110] sm:$0xff]
    %v111 = vld [vmem:[%s1 + $0x118] sm:$0xff]
    %v112 = vld [vmem:[%s1 + $0x120] sm:$0xff]
    %v113 = vld [vmem:[%s1 + $0x128] sm:$0xff]
    %v114 = vld [vmem:[%s1 + $0x130] sm:$0x1]
    %v115 = vlaneseq
    %v116 = vshrl.u32 %v115, 7
    %v117 = vsub.s32 0, %v116
    %v118 = vrot.slane %v80, %v117
    %vm119 = vcmask 261120
    %v121 = vsel %vm119, %v12, 0
    %v124 = vsel %vm119, %v13, 0
    %v127 = vsel %vm119, %v14, 0
    %v130 = vsel %vm119, %v15, 0
    %v133 = vsel %vm119, %v16, 0
    %v136 = vsel %vm119, %v17, 0
    %v139 = vsel %vm119, %v18, 0
    %v142 = vsel %vm119, %v19, 0
    %v145 = vsel %vm119, %v20, 0
    %v148 = vsel %vm119, %v21, 0
    %v151 = vsel %vm119, %v22, 0
    %v154 = vsel %vm119, %v23, 0
    %v157 = vsel %vm119, %v24, 0
    %v160 = vsel %vm119, %v25, 0
    %v163 = vsel %vm119, %v26, 0
    %v166 = vsel %vm119, %v27, 0
    %v169 = vsel %vm119, %v28, 0
    %v172 = vsel %vm119, %v29, 0
    %v175 = vsel %vm119, %v30, 0
    %v178 = vsel %vm119, %v31, 0
    %v181 = vsel %vm119, %v32, 0
    %v184 = vsel %vm119, %v33, 0
    %v187 = vsel %vm119, %v34, 0
    %v190 = vsel %vm119, %v35, 0
    %v193 = vsel %vm119, %v36, 0
    %v196 = vsel %vm119, %v37, 0
    %v199 = vsel %vm119, %v38, 0
    %v202 = vsel %vm119, %v39, 0
    %v205 = vsel %vm119, %v40, 0
    %v208 = vsel %vm119, %v41, 0
    %v211 = vsel %vm119, %v42, 0
    %v214 = vsel %vm119, %v43, 0
    %v217 = vsel %vm119, %v44, 0
    %v220 = vsel %vm119, %v45, 0
    %v223 = vsel %vm119, %v46, 0
    %v226 = vsel %vm119, %v47, 0
    %v229 = vsel %vm119, %v48, 0
    %v232 = vsel %vm119, %v49, 0
    %v235 = vsel %vm119, %v50, 0
    %v238 = vsel %vm119, %v51, 0
    %v241 = vsel %vm119, %v52, 0
    %v244 = vsel %vm119, %v53, 0
    %v247 = vsel %vm119, %v54, 0
    %v250 = vsel %vm119, %v55, 0
    %v253 = vsel %vm119, %v56, 0
    %v256 = vsel %vm119, %v57, 0
    %v259 = vsel %vm119, %v58, 0
    %v262 = vsel %vm119, %v59, 0
    %v265 = vsel %vm119, %v60, 0
    %v268 = vsel %vm119, %v61, 0
    %v271 = vsel %vm119, %v62, 0
    %v274 = vsel %vm119, %v63, 0
    %v277 = vsel %vm119, %v64, 0
    %v280 = vsel %vm119, %v65, 0
    %v283 = vsel %vm119, %v66, 0
    %v286 = vsel %vm119, %v67, 0
    %v289 = vsel %vm119, %v68, 0
    %v292 = vsel %vm119, %v69, 0
    %v295 = vsel %vm119, %v70, 0
    %v298 = vsel %vm119, %v71, 0
    %v301 = vsel %vm119, %v72, 0
    %v304 = vsel %vm119, %v73, 0
    %v307 = vsel %vm119, %v74, 0
    %v310 = vsel %vm119, %v75, 0
    %312 = vmatprep.subr.mxu0 0.0
    %313 = vmatpush1.msra.mxu0 %v76
    %314 = vmatprep.subr.mxu0 0.0
    %315 = vmatpush1.msra.mxu0 %v77
    %316 = vmatprep.subr.mxu0 0.0
    %317 = vmatpush1.msra.mxu0 %v78
    %318 = vmatprep.subr.mxu0 0.0
    %319 = vmatpush1.msra.mxu0 %v79
    %320 = vmatprep.subr.mxu0 0.0
    %321 = vmatpush1.msra.mxu0 0.0
    %322 = vmatprep.subr.mxu0 0.0
    %323 = vmatpush1.msra.mxu0 0.0
    %324 = vmatprep.subr.mxu0 0.0
    %325 = vmatpush1.msra.mxu0 0.0
    %326 = vmatprep.subr.mxu0 0.0
    %327 = vmatpush1.msra.mxu0 0.0
    %328 = vmatprep.subr.mxu0 0.0
    %329 = vmatpush1.msra.mxu0 0.0
    %330 = vmatprep.subr.mxu0 0.0
    %331 = vmatpush1.msra.mxu0 0.0
    %332 = vmatprep.subr.mxu0 0.0
    %333 = vmatpush1.msra.mxu0 0.0
    %334 = vmatprep.subr.mxu0 0.0
    %335 = vmatpush1.msra.mxu0 0.0
    %336 = vmatprep.subr.mxu0 0.0
    %337 = vmatpush1.msra.mxu0 0.0
    %338 = vmatprep.subr.mxu0 0.0
    %339 = vmatpush1.msra.mxu0 0.0
    %340 = vmatprep.subr.mxu0 0.0
    %341 = vmatpush1.msra.mxu0 0.0
    %342 = vmatprep.subr.mxu0 0.0
    %343 = vmatpush1.msra.mxu0 0.0
    %344 = vmatprep.subr.mxu0 0.0
    %345 = vmatpush1.msra.mxu0 0.0
    %346 = vmatprep.subr.mxu0 0.0
    %347 = vmatpush1.msra.mxu0 0.0
    %348 = vmatprep.subr.mxu0 0.0
    %349 = vmatpush1.msra.mxu0 0.0
    %350 = vmatprep.subr.mxu0 0.0
    %351 = vmatpush1.msra.mxu0 0.0
    %352 = vmatprep.subr.mxu0 0.0
    %353 = vmatpush1.msra.mxu0 0.0
    %354 = vmatprep.subr.mxu0 0.0
    %355 = vmatpush1.msra.mxu0 0.0
    %356 = vmatprep.subr.mxu0 0.0
    %357 = vmatpush1.msra.mxu0 0.0
    %358 = vmatprep.subr.mxu0 0.0
    %359 = vmatpush1.msra.mxu0 0.0
    %360 = vmatprep.subr.mxu0 0.0
    %361 = vmatpush1.msra.mxu0 0.0
    %362 = vmatprep.subr.mxu0 0.0
    %363 = vmatpush1.msra.mxu0 0.0
    %364 = vmatprep.subr.mxu0 0.0
    %365 = vmatpush1.msra.mxu0 0.0
    %366 = vmatprep.subr.mxu0 0.0
    %367 = vmatpush1.msra.mxu0 0.0
    %368 = vmatprep.subr.mxu0 0.0
    %369 = vmatpush1.msra.mxu0 0.0
    %370 = vmatprep.subr.mxu0 0.0
    %371 = vmatpush1.msra.mxu0 0.0
    %372 = vmatprep.subr.mxu0 0.0
    %373 = vmatpush1.msra.mxu0 0.0
    %374 = vmatprep.subr.mxu0 0.0
    %375 = vmatpush1.msra.mxu0 0.0
    %376 = vmatprep.mubr.f32.mxu0 0.0
    %377 = vmatmul.mubr.f32.gmra.mrb[0].mxu0 %v121
    %v378 = vpop.f32.mrb[0].mxu0
    %v379 = vadd.f32 %v118, %v378
    %v380 = vpop.f32.mrb[0].mxu0
    %381 = vmatprep.mubr.f32.mxu0 0.0
    %382 = vmatmul.mubr.f32.gmra.mrb[0].mxu0 %v124
    %v383 = vpop.f32.mrb[0].mxu0
    %v384 = vadd.f32 %v118, %v383
    %v385 = vpop.f32.mrb[0].mxu0
    %386 = vmatprep.mubr.f32.mxu0 0.0
    %387 = vmatmul.mubr.f32.gmra.mrb[0].mxu0 %v127
    %v388 = vpop.f32.mrb[0].mxu0
    %v389 = vadd.f32 %v118, %v388
    %v390 = vpop.f32.mrb[0].mxu0
    %391 = vmatprep.mubr.f32.mxu0 0.0
    %392 = vmatmul.mubr.f32.gmra.mrb[0].mxu0 %v130
    %v393 = vpop.f32.mrb[0].mxu0
    %v394 = vadd.f32 %v118, %v393
    %v395 = vpop.f32.mrb[0].mxu0
    %396 = vmatprep.mubr.f32.mxu0 0.0
    %397 = vmatmul.mubr.f32.gmra.mrb[0].mxu0 %v133
    %v398 = vpop.f32.mrb[0].mxu0
    %v399 = vadd.f32 %v118, %v398
    %v400 = vpop.f32.mrb[0].mxu0
    %401 = vmatprep.mubr.f32.mxu0 0.0
    %402 = vmatmul.mubr.f32.gmra.mrb[0].mxu0 %v136
    %v403 = vpop.f32.mrb[0].mxu0
    %v404 = vadd.f32 %v118, %v403
    %v405 = vpop.f32.mrb[0].mxu0
    %406 = vmatprep.mubr.f32.mxu0 0.0
    %407 = vmatmul.mubr.f32.gmra.mrb[0].mxu0 %v139
    %v408 = vpop.f32.mrb[0].mxu0
    %v409 = vadd.f32 %v118, %v408
    %v410 = vpop.f32.mrb[0].mxu0
    %411 = vmatprep.mubr.f32.mxu0 0.0
    %412 = vmatmul.mubr.f32.gmra.mrb[0].mxu0 %v142
    %v413 = vpop.f32.mrb[0].mxu0
    %v414 = vadd.f32 %v118, %v413
    %v415 = vpop.f32.mrb[0].mxu0
    %416 = vmatprep.mubr.f32.mxu0 0.0
    %417 = vmatmul.mubr.f32.gmra.mrb[0].mxu0 %v145
    %v418 = vpop.f32.mrb[0].mxu0
    %v419 = vadd.f32 %v118, %v418
    %v420 = vpop.f32.mrb[0].mxu0
    %421 = vmatprep.mubr.f32.mxu0 0.0
    %422 = vmatmul.mubr.f32.gmra.mrb[0].mxu0 %v148
    %v423 = vpop.f32.mrb[0].mxu0
    %v424 = vadd.f32 %v118, %v423
    %v425 = vpop.f32.mrb[0].mxu0
    %426 = vmatprep.mubr.f32.mxu0 0.0
    %427 = vmatmul.mubr.f32.gmra.mrb[0].mxu0 %v151
    %v428 = vpop.f32.mrb[0].mxu0
    %v429 = vadd.f32 %v118, %v428
    %v430 = vpop.f32.mrb[0].mxu0
    %431 = vmatprep.mubr.f32.mxu0 0.0
    %432 = vmatmul.mubr.f32.gmra.mrb[0].mxu0 %v154
    %v433 = vpop.f32.mrb[0].mxu0
    %v434 = vadd.f32 %v118, %v433
    %v435 = vpop.f32.mrb[0].mxu0
    %436 = vmatprep.mubr.f32.mxu0 0.0
    %437 = vmatmul.mubr.f32.gmra.mrb[0].mxu0 %v157
    %v438 = vpop.f32.mrb[0].mxu0
    %v439 = vadd.f32 %v118, %v438
    %v440 = vpop.f32.mrb[0].mxu0
    %441 = vmatprep.mubr.f32.mxu0 0.0
    %442 = vmatmul.mubr.f32.gmra.mrb[0].mxu0 %v160
    %v443 = vpop.f32.mrb[0].mxu0
    %v444 = vadd.f32 %v118, %v443
    %v445 = vpop.f32.mrb[0].mxu0
    %446 = vmatprep.mubr.f32.mxu0 0.0
    %447 = vmatmul.mubr.f32.gmra.mrb[0].mxu0 %v163
    %v448 = vpop.f32.mrb[0].mxu0
    %v449 = vadd.f32 %v118, %v448
    %v450 = vpop.f32.mrb[0].mxu0
    %451 = vmatprep.mubr.f32.mxu0 0.0
    %452 = vmatmul.mubr.f32.gmra.mrb[0].mxu0 %v166
    %v453 = vpop.f32.mrb[0].mxu0
    %v454 = vadd.f32 %v118, %v453
    %v455 = vpop.f32.mrb[0].mxu0
    %456 = vmatprep.mubr.f32.mxu0 0.0
    %457 = vmatmul.mubr.f32.gmra.mrb[0].mxu0 %v169
    %v458 = vpop.f32.mrb[0].mxu0
    %v459 = vadd.f32 %v118, %v458
    %v460 = vpop.f32.mrb[0].mxu0
    %461 = vmatprep.mubr.f32.mxu0 0.0
    %462 = vmatmul.mubr.f32.gmra.mrb[0].mxu0 %v172
    %v463 = vpop.f32.mrb[0].mxu0
    %v464 = vadd.f32 %v118, %v463
    %v465 = vpop.f32.mrb[0].mxu0
    %466 = vmatprep.mubr.f32.mxu0 0.0
    %467 = vmatmul.mubr.f32.gmra.mrb[0].mxu0 %v175
    %v468 = vpop.f32.mrb[0].mxu0
    %v469 = vadd.f32 %v118, %v468
    %v470 = vpop.f32.mrb[0].mxu0
    %471 = vmatprep.mubr.f32.mxu0 0.0
    %472 = vmatmul.mubr.f32.gmra.mrb[0].mxu0 %v178
    %v473 = vpop.f32.mrb[0].mxu0
    %v474 = vadd.f32 %v118, %v473
    %v475 = vpop.f32.mrb[0].mxu0
    %476 = vmatprep.mubr.f32.mxu0 0.0
    %477 = vmatmul.mubr.f32.gmra.mrb[0].mxu0 %v181
    %v478 = vpop.f32.mrb[0].mxu0
    %v479 = vadd.f32 %v118, %v478
    %v480 = vpop.f32.mrb[0].mxu0
    %481 = vmatprep.mubr.f32.mxu0 0.0
    %482 = vmatmul.mubr.f32.gmra.mrb[0].mxu0 %v184
    %v483 = vpop.f32.mrb[0].mxu0
    %v484 = vadd.f32 %v118, %v483
    %v485 = vpop.f32.mrb[0].mxu0
    %486 = vmatprep.mubr.f32.mxu0 0.0
    %487 = vmatmul.mubr.f32.gmra.mrb[0].mxu0 %v187
    %v488 = vpop.f32.mrb[0].mxu0
    %v489 = vadd.f32 %v118, %v488
    %v490 = vpop.f32.mrb[0].mxu0
    %491 = vmatprep.mubr.f32.mxu0 0.0
    %492 = vmatmul.mubr.f32.gmra.mrb[0].mxu0 %v190
    %v493 = vpop.f32.mrb[0].mxu0
    %v494 = vadd.f32 %v118, %v493
    %v495 = vpop.f32.mrb[0].mxu0
    %496 = vmatprep.mubr.f32.mxu0 0.0
    %497 = vmatmul.mubr.f32.gmra.mrb[0].mxu0 %v193
    %v498 = vpop.f32.mrb[0].mxu0
    %v499 = vadd.f32 %v118, %v498
    %v500 = vpop.f32.mrb[0].mxu0
    %501 = vmatprep.mubr.f32.mxu0 0.0
    %502 = vmatmul.mubr.f32.gmra.mrb[0].mxu0 %v196
    %v503 = vpop.f32.mrb[0].mxu0
    %v504 = vadd.f32 %v118, %v503
    %v505 = vpop.f32.mrb[0].mxu0
    %506 = vmatprep.mubr.f32.mxu0 0.0
    %507 = vmatmul.mubr.f32.gmra.mrb[0].mxu0 %v199
    %v508 = vpop.f32.mrb[0].mxu0
    %v509 = vadd.f32 %v118, %v508
    %v510 = vpop.f32.mrb[0].mxu0
    %511 = vmatprep.mubr.f32.mxu0 0.0
    %512 = vmatmul.mubr.f32.gmra.mrb[0].mxu0 %v202
    %v513 = vpop.f32.mrb[0].mxu0
    %v514 = vadd.f32 %v118, %v513
    %v515 = vpop.f32.mrb[0].mxu0
    %516 = vmatprep.mubr.f32.mxu0 0.0
    %517 = vmatmul.mubr.f32.gmra.mrb[0].mxu0 %v205
    %v518 = vpop.f32.mrb[0].mxu0
    %v519 = vadd.f32 %v118, %v518
    %v520 = vpop.f32.mrb[0].mxu0
    %521 = vmatprep.mubr.f32.mxu0 0.0
    %522 = vmatmul.mubr.f32.gmra.mrb[0].mxu0 %v208
    %v523 = vpop.f32.mrb[0].mxu0
    %v524 = vadd.f32 %v118, %v523
    %v525 = vpop.f32.mrb[0].mxu0
    %526 = vmatprep.mubr.f32.mxu0 0.0
    %527 = vmatmul.mubr.f32.gmra.mrb[0].mxu0 %v211
    %v528 = vpop.f32.mrb[0].mxu0
    %v529 = vadd.f32 %v118, %v528
    %v530 = vpop.f32.mrb[0].mxu0
    %531 = vmatprep.mubr.f32.mxu0 0.0
    %532 = vmatmul.mubr.f32.gmra.mrb[0].mxu0 %v214
    %v533 = vpop.f32.mrb[0].mxu0
    %v534 = vadd.f32 %v118, %v533
    %v535 = vpop.f32.mrb[0].mxu0
    %536 = vmatprep.mubr.f32.mxu0 0.0
    %537 = vmatmul.mubr.f32.gmra.mrb[0].mxu0 %v217
    %v538 = vpop.f32.mrb[0].mxu0
    %v539 = vadd.f32 %v118, %v538
    %v540 = vpop.f32.mrb[0].mxu0
    %541 = vmatprep.mubr.f32.mxu0 0.0
    %542 = vmatmul.mubr.f32.gmra.mrb[0].mxu0 %v220
    %v543 = vpop.f32.mrb[0].mxu0
    %v544 = vadd.f32 %v118, %v543
    %v545 = vpop.f32.mrb[0].mxu0
    %546 = vmatprep.mubr.f32.mxu0 0.0
    %547 = vmatmul.mubr.f32.gmra.mrb[0].mxu0 %v223
    %v548 = vpop.f32.mrb[0].mxu0
    %v549 = vadd.f32 %v118, %v548
    %v550 = vpop.f32.mrb[0].mxu0
    %551 = vmatprep.mubr.f32.mxu0 0.0
    %552 = vmatmul.mubr.f32.gmra.mrb[0].mxu0 %v226
    %v553 = vpop.f32.mrb[0].mxu0
    %v554 = vadd.f32 %v118, %v553
    %v555 = vpop.f32.mrb[0].mxu0
    %556 = vmatprep.mubr.f32.mxu0 0.0
    %557 = vmatmul.mubr.f32.gmra.mrb[0].mxu0 %v229
    %v558 = vpop.f32.mrb[0].mxu0
    %v559 = vadd.f32 %v118, %v558
    %v560 = vpop.f32.mrb[0].mxu0
    %561 = vmatprep.mubr.f32.mxu0 0.0
    %562 = vmatmul.mubr.f32.gmra.mrb[0].mxu0 %v232
    %v563 = vpop.f32.mrb[0].mxu0
    %v564 = vadd.f32 %v118, %v563
    %v565 = vpop.f32.mrb[0].mxu0
    %566 = vmatprep.mubr.f32.mxu0 0.0
    %567 = vmatmul.mubr.f32.gmra.mrb[0].mxu0 %v235
    %v568 = vpop.f32.mrb[0].mxu0
    %v569 = vadd.f32 %v118, %v568
    %v570 = vpop.f32.mrb[0].mxu0
    %571 = vmatprep.mubr.f32.mxu0 0.0
    %572 = vmatmul.mubr.f32.gmra.mrb[0].mxu0 %v238
    %v573 = vpop.f32.mrb[0].mxu0
    %v574 = vadd.f32 %v118, %v573
    %v575 = vpop.f32.mrb[0].mxu0
    %576 = vmatprep.mubr.f32.mxu0 0.0
    %577 = vmatmul.mubr.f32.gmra.mrb[0].mxu0 %v241
    %v578 = vpop.f32.mrb[0].mxu0
    %v579 = vadd.f32 %v118, %v578
    %v580 = vpop.f32.mrb[0].mxu0
    %581 = vmatprep.mubr.f32.mxu0 0.0
    %582 = vmatmul.mubr.f32.gmra.mrb[0].mxu0 %v244
    %v583 = vpop.f32.mrb[0].mxu0
    %v584 = vadd.f32 %v118, %v583
    %v585 = vpop.f32.mrb[0].mxu0
    %586 = vmatprep.mubr.f32.mxu0 0.0
    %587 = vmatmul.mubr.f32.gmra.mrb[0].mxu0 %v247
    %v588 = vpop.f32.mrb[0].mxu0
    %v589 = vadd.f32 %v118, %v588
    %v590 = vpop.f32.mrb[0].mxu0
    %591 = vmatprep.mubr.f32.mxu0 0.0
    %592 = vmatmul.mubr.f32.gmra.mrb[0].mxu0 %v250
    %v593 = vpop.f32.mrb[0].mxu0
    %v594 = vadd.f32 %v118, %v593
    %v595 = vpop.f32.mrb[0].mxu0
    %596 = vmatprep.mubr.f32.mxu0 0.0
    %597 = vmatmul.mubr.f32.gmra.mrb[0].mxu0 %v253
    %v598 = vpop.f32.mrb[0].mxu0
    %v599 = vadd.f32 %v118, %v598
    %v600 = vpop.f32.mrb[0].mxu0
    %601 = vmatprep.mubr.f32.mxu0 0.0
    %602 = vmatmul.mubr.f32.gmra.mrb[0].mxu0 %v256
    %v603 = vpop.f32.mrb[0].mxu0
    %v604 = vadd.f32 %v118, %v603
    %v605 = vpop.f32.mrb[0].mxu0
    %606 = vmatprep.mubr.f32.mxu0 0.0
    %607 = vmatmul.mubr.f32.gmra.mrb[0].mxu0 %v259
    %v608 = vpop.f32.mrb[0].mxu0
    %v609 = vadd.f32 %v118, %v608
    %v610 = vpop.f32.mrb[0].mxu0
    %611 = vmatprep.mubr.f32.mxu0 0.0
    %612 = vmatmul.mubr.f32.gmra.mrb[0].mxu0 %v262
    %v613 = vpop.f32.mrb[0].mxu0
    %v614 = vadd.f32 %v118, %v613
    %v615 = vpop.f32.mrb[0].mxu0
    %616 = vmatprep.mubr.f32.mxu0 0.0
    %617 = vmatmul.mubr.f32.gmra.mrb[0].mxu0 %v265
    %v618 = vpop.f32.mrb[0].mxu0
    %v619 = vadd.f32 %v118, %v618
    %v620 = vpop.f32.mrb[0].mxu0
    %621 = vmatprep.mubr.f32.mxu0 0.0
    %622 = vmatmul.mubr.f32.gmra.mrb[0].mxu0 %v268
    %v623 = vpop.f32.mrb[0].mxu0
    %v624 = vadd.f32 %v118, %v623
    %v625 = vpop.f32.mrb[0].mxu0
    %626 = vmatprep.mubr.f32.mxu0 0.0
    %627 = vmatmul.mubr.f32.gmra.mrb[0].mxu0 %v271
    %v628 = vpop.f32.mrb[0].mxu0
    %v629 = vadd.f32 %v118, %v628
    %v630 = vpop.f32.mrb[0].mxu0
    %631 = vmatprep.mubr.f32.mxu0 0.0
    %632 = vmatmul.mubr.f32.gmra.mrb[0].mxu0 %v274
    %v633 = vpop.f32.mrb[0].mxu0
    %v634 = vadd.f32 %v118, %v633
    %v635 = vpop.f32.mrb[0].mxu0
    %636 = vmatprep.mubr.f32.mxu0 0.0
    %637 = vmatmul.mubr.f32.gmra.mrb[0].mxu0 %v277
    %v638 = vpop.f32.mrb[0].mxu0
    %v639 = vadd.f32 %v118, %v638
    %v640 = vpop.f32.mrb[0].mxu0
    %641 = vmatprep.mubr.f32.mxu0 0.0
    %642 = vmatmul.mubr.f32.gmra.mrb[0].mxu0 %v280
    %v643 = vpop.f32.mrb[0].mxu0
    %v644 = vadd.f32 %v118, %v643
    %v645 = vpop.f32.mrb[0].mxu0
    %646 = vmatprep.mubr.f32.mxu0 0.0
    %647 = vmatmul.mubr.f32.gmra.mrb[0].mxu0 %v283
    %v648 = vpop.f32.mrb[0].mxu0
    %v649 = vadd.f32 %v118, %v648
    %v650 = vpop.f32.mrb[0].mxu0
    %651 = vmatprep.mubr.f32.mxu0 0.0
    %652 = vmatmul.mubr.f32.gmra.mrb[0].mxu0 %v286
    %v653 = vpop.f32.mrb[0].mxu0
    %v654 = vadd.f32 %v118, %v653
    %v655 = vpop.f32.mrb[0].mxu0
    %656 = vmatprep.mubr.f32.mxu0 0.0
    %657 = vmatmul.mubr.f32.gmra.mrb[0].mxu0 %v289
    %v658 = vpop.f32.mrb[0].mxu0
    %v659 = vadd.f32 %v118, %v658
    %v660 = vpop.f32.mrb[0].mxu0
    %661 = vmatprep.mubr.f32.mxu0 0.0
    %662 = vmatmul.mubr.f32.gmra.mrb[0].mxu0 %v292
    %v663 = vpop.f32.mrb[0].mxu0
    %v664 = vadd.f32 %v118, %v663
    %v665 = vpop.f32.mrb[0].mxu0
    %666 = vmatprep.mubr.f32.mxu0 0.0
    %667 = vmatmul.mubr.f32.gmra.mrb[0].mxu0 %v295
    %v668 = vpop.f32.mrb[0].mxu0
    %v669 = vadd.f32 %v118, %v668
    %v670 = vpop.f32.mrb[0].mxu0
    %671 = vmatprep.mubr.f32.mxu0 0.0
    %672 = vmatmul.mubr.f32.gmra.mrb[0].mxu0 %v298
    %v673 = vpop.f32.mrb[0].mxu0
    %v674 = vadd.f32 %v118, %v673
    %v675 = vpop.f32.mrb[0].mxu0
    %676 = vmatprep.mubr.f32.mxu0 0.0
    %677 = vmatmul.mubr.f32.gmra.mrb[0].mxu0 %v301
    %v678 = vpop.f32.mrb[0].mxu0
    %v679 = vadd.f32 %v118, %v678
    %v680 = vpop.f32.mrb[0].mxu0
    %681 = vmatprep.mubr.f32.mxu0 0.0
    %682 = vmatmul.mubr.f32.gmra.mrb[0].mxu0 %v304
    %v683 = vpop.f32.mrb[0].mxu0
    %v684 = vadd.f32 %v118, %v683
    %v685 = vpop.f32.mrb[0].mxu0
    %686 = vmatprep.mubr.f32.mxu0 0.0
    %687 = vmatmul.mubr.f32.gmra.mrb[0].mxu0 %v307
    %v688 = vpop.f32.mrb[0].mxu0
    %v689 = vadd.f32 %v118, %v688
    %v690 = vpop.f32.mrb[0].mxu0
    %691 = vmatprep.mubr.f32.mxu0 0.0
    %692 = vmatmul.mubr.f32.gmra.mrb[0].mxu0 %v310
    %v693 = vpop.f32.mrb[0].mxu0
    %v694 = vadd.f32 %v118, %v693
    %v695 = vpop.f32.mrb[0].mxu0
    %696 = vdwg.mxu0
    %v697 = vmax.f32 %v379, 0.0
    %v698 = vmax.f32 %v384, 0.0
    %v699 = vmax.f32 %v389, 0.0
    %v700 = vmax.f32 %v394, 0.0
    %v701 = vmax.f32 %v399, 0.0
    %v702 = vmax.f32 %v404, 0.0
    %v703 = vmax.f32 %v409, 0.0
    %v704 = vmax.f32 %v414, 0.0
    %v705 = vmax.f32 %v419, 0.0
    %v706 = vmax.f32 %v424, 0.0
    %v707 = vmax.f32 %v429, 0.0
    %v708 = vmax.f32 %v434, 0.0
    %v709 = vmax.f32 %v439, 0.0
    %v710 = vmax.f32 %v444, 0.0
    %v711 = vmax.f32 %v449, 0.0
    %v712 = vmax.f32 %v454, 0.0
    %v713 = vmax.f32 %v459, 0.0
    %v714 = vmax.f32 %v464, 0.0
    %v715 = vmax.f32 %v469, 0.0
    %v716 = vmax.f32 %v474, 0.0
    %v717 = vmax.f32 %v479, 0.0
    %v718 = vmax.f32 %v484, 0.0
    %v719 = vmax.f32 %v489, 0.0
    %v720 = vmax.f32 %v494, 0.0
    %v721 = vmax.f32 %v499, 0.0
    %v722 = vmax.f32 %v504, 0.0
    %v723 = vmax.f32 %v509, 0.0
    %v724 = vmax.f32 %v514, 0.0
    %v725 = vmax.f32 %v519, 0.0
    %v726 = vmax.f32 %v524, 0.0
    %v727 = vmax.f32 %v529, 0.0
    %v728 = vmax.f32 %v534, 0.0
    %v729 = vmax.f32 %v539, 0.0
    %v730 = vmax.f32 %v544, 0.0
    %v731 = vmax.f32 %v549, 0.0
    %v732 = vmax.f32 %v554, 0.0
    %v733 = vmax.f32 %v559, 0.0
    %v734 = vmax.f32 %v564, 0.0
    %v735 = vmax.f32 %v569, 0.0
    %v736 = vmax.f32 %v574, 0.0
    %v737 = vmax.f32 %v579, 0.0
    %v738 = vmax.f32 %v584, 0.0
    %v739 = vmax.f32 %v589, 0.0
    %v740 = vmax.f32 %v594, 0.0
    %v741 = vmax.f32 %v599, 0.0
    %v742 = vmax.f32 %v604, 0.0
    %v743 = vmax.f32 %v609, 0.0
    %v744 = vmax.f32 %v614, 0.0
    %v745 = vmax.f32 %v619, 0.0
    %v746 = vmax.f32 %v624, 0.0
    %v747 = vmax.f32 %v629, 0.0
    %v748 = vmax.f32 %v634, 0.0
    %v749 = vmax.f32 %v639, 0.0
    %v750 = vmax.f32 %v644, 0.0
    %v751 = vmax.f32 %v649, 0.0
    %v752 = vmax.f32 %v654, 0.0
    %v753 = vmax.f32 %v659, 0.0
    %v754 = vmax.f32 %v664, 0.0
    %v755 = vmax.f32 %v669, 0.0
    %v756 = vmax.f32 %v674, 0.0
    %v757 = vmax.f32 %v679, 0.0
    %v758 = vmax.f32 %v684, 0.0
    %v759 = vmax.f32 %v689, 0.0
    %v760 = vmax.f32 %v694, 0.0
    %v761 = vlaneseq
    %v762 = vshrl.u32 %v761, 7
    %v763 = vsub.s32 0, %v762
    %v764 = vrot.slane %v97, %v763
    %765 = vmatprep.subr.mxu0 0.0
    %766 = vmatpush1.msra.mxu0 %v81
    %767 = vmatprep.subr.mxu0 0.0
    %768 = vmatpush1.msra.mxu0 %v82
    %769 = vmatprep.subr.mxu0 0.0
    %770 = vmatpush1.msra.mxu0 %v83
    %771 = vmatprep.subr.mxu0 0.0
    %772 = vmatpush1.msra.mxu0 %v84
    %773 = vmatprep.subr.mxu0 0.0
    %774 = vmatpush1.msra.mxu0 %v85
    %775 = vmatprep.subr.mxu0 0.0
    %776 = vmatpush1.msra.mxu0 %v86
    %777 = vmatprep.subr.mxu0 0.0
    %778 = vmatpush1.msra.mxu0 %v87
    %779 = vmatprep.subr.mxu0 0.0
    %780 = vmatpush1.msra.mxu0 %v88
    %781 = vmatprep.subr.mxu0 0.0
    %782 = vmatpush1.msra.mxu0 %v89
    %783 = vmatprep.subr.mxu0 0.0
    %784 = vmatpush1.msra.mxu0 %v90
    %785 = vmatprep.subr.mxu0 0.0
    %786 = vmatpush1.msra.mxu0 %v91
    %787 = vmatprep.subr.mxu0 0.0
    %788 = vmatpush1.msra.mxu0 %v92
    %789 = vmatprep.subr.mxu0 0.0
    %790 = vmatpush1.msra.mxu0 %v93
    %791 = vmatprep.subr.mxu0 0.0
    %792 = vmatpush1.msra.mxu0 %v94
    %793 = vmatprep.subr.mxu0 0.0
    %794 = vmatpush1.msra.mxu0 %v95
    %795 = vmatprep.subr.mxu0 0.0
    %796 = vmatpush1.msra.mxu0 %v96
    %797 = vmatprep.subr.mxu0 0.0
    %798 = vmatpush1.msra.mxu0 0.0
    %799 = vmatprep.subr.mxu0 0.0
    %800 = vmatpush1.msra.mxu0 0.0
    %801 = vmatprep.subr.mxu0 0.0
    %802 = vmatpush1.msra.mxu0 0.0
    %803 = vmatprep.subr.mxu0 0.0
    %804 = vmatpush1.msra.mxu0 0.0
    %805 = vmatprep.subr.mxu0 0.0
    %806 = vmatpush1.msra.mxu0 0.0
    %807 = vmatprep.subr.mxu0 0.0
    %808 = vmatpush1.msra.mxu0 0.0
    %809 = vmatprep.subr.mxu0 0.0
    %810 = vmatpush1.msra.mxu0 0.0
    %811 = vmatprep.subr.mxu0 0.0
    %812 = vmatpush1.msra.mxu0 0.0
    %813 = vmatprep.subr.mxu0 0.0
    %814 = vmatpush1.msra.mxu0 0.0
    %815 = vmatprep.subr.mxu0 0.0
    %816 = vmatpush1.msra.mxu0 0.0
    %817 = vmatprep.subr.mxu0 0.0
    %818 = vmatpush1.msra.mxu0 0.0
    %819 = vmatprep.subr.mxu0 0.0
    %820 = vmatpush1.msra.mxu0 0.0
    %821 = vmatprep.subr.mxu0 0.0
    %822 = vmatpush1.msra.mxu0 0.0
    %823 = vmatprep.subr.mxu0 0.0
    %824 = vmatpush1.msra.mxu0 0.0
    %825 = vmatprep.subr.mxu0 0.0
    %826 = vmatpush1.msra.mxu0 0.0
    %827 = vmatprep.subr.mxu0 0.0
    %828 = vmatpush1.msra.mxu0 0.0
    %829 = vmatprep.mubr.f32.mxu0 0.0
    %830 = vmatmul.mubr.f32.gmra.mrb[0].mxu0 %v697
    %v831 = vpop.f32.mrb[0].mxu0
    %v832 = vadd.f32 %v764, %v831
    %v833 = vpop.f32.mrb[0].mxu0
    %834 = vmatprep.mubr.f32.mxu0 0.0
    %835 = vmatmul.mubr.f32.gmra.mrb[0].mxu0 %v698
    %v836 = vpop.f32.mrb[0].mxu0
    %v837 = vadd.f32 %v764, %v836
    %v838 = vpop.f32.mrb[0].mxu0
    %839 = vmatprep.mubr.f32.mxu0 0.0
    %840 = vmatmul.mubr.f32.gmra.mrb[0].mxu0 %v699
    %v841 = vpop.f32.mrb[0].mxu0
    %v842 = vadd.f32 %v764, %v841
    %v843 = vpop.f32.mrb[0].mxu0
    %844 = vmatprep.mubr.f32.mxu0 0.0
    %845 = vmatmul.mubr.f32.gmra.mrb[0].mxu0 %v700
    %v846 = vpop.f32.mrb[0].mxu0
    %v847 = vadd.f32 %v764, %v846
    %v848 = vpop.f32.mrb[0].mxu0
    %849 = vmatprep.mubr.f32.mxu0 0.0
    %850 = vmatmul.mubr.f32.gmra.mrb[0].mxu0 %v701
    %v851 = vpop.f32.mrb[0].mxu0
    %v852 = vadd.f32 %v764, %v851
    %v853 = vpop.f32.mrb[0].mxu0
    %854 = vmatprep.mubr.f32.mxu0 0.0
    %855 = vmatmul.mubr.f32.gmra.mrb[0].mxu0 %v702
    %v856 = vpop.f32.mrb[0].mxu0
    %v857 = vadd.f32 %v764, %v856
    %v858 = vpop.f32.mrb[0].mxu0
    %859 = vmatprep.mubr.f32.mxu0 0.0
    %860 = vmatmul.mubr.f32.gmra.mrb[0].mxu0 %v703
    %v861 = vpop.f32.mrb[0].mxu0
    %v862 = vadd.f32 %v764, %v861
    %v863 = vpop.f32.mrb[0].mxu0
    %864 = vmatprep.mubr.f32.mxu0 0.0
    %865 = vmatmul.mubr.f32.gmra.mrb[0].mxu0 %v704
    %v866 = vpop.f32.mrb[0].mxu0
    %v867 = vadd.f32 %v764, %v866
    %v868 = vpop.f32.mrb[0].mxu0
    %869 = vmatprep.mubr.f32.mxu0 0.0
    %870 = vmatmul.mubr.f32.gmra.mrb[0].mxu0 %v705
    %v871 = vpop.f32.mrb[0].mxu0
    %v872 = vadd.f32 %v764, %v871
    %v873 = vpop.f32.mrb[0].mxu0
    %874 = vmatprep.mubr.f32.mxu0 0.0
    %875 = vmatmul.mubr.f32.gmra.mrb[0].mxu0 %v706
    %v876 = vpop.f32.mrb[0].mxu0
    %v877 = vadd.f32 %v764, %v876
    %v878 = vpop.f32.mrb[0].mxu0
    %879 = vmatprep.mubr.f32.mxu0 0.0
    %880 = vmatmul.mubr.f32.gmra.mrb[0].mxu0 %v707
    %v881 = vpop.f32.mrb[0].mxu0
    %v882 = vadd.f32 %v764, %v881
    %v883 = vpop.f32.mrb[0].mxu0
    %884 = vmatprep.mubr.f32.mxu0 0.0
    %885 = vmatmul.mubr.f32.gmra.mrb[0].mxu0 %v708
    %v886 = vpop.f32.mrb[0].mxu0
    %v887 = vadd.f32 %v764, %v886
    %v888 = vpop.f32.mrb[0].mxu0
    %889 = vmatprep.mubr.f32.mxu0 0.0
    %890 = vmatmul.mubr.f32.gmra.mrb[0].mxu0 %v709
    %v891 = vpop.f32.mrb[0].mxu0
    %v892 = vadd.f32 %v764, %v891
    %v893 = vpop.f32.mrb[0].mxu0
    %894 = vmatprep.mubr.f32.mxu0 0.0
    %895 = vmatmul.mubr.f32.gmra.mrb[0].mxu0 %v710
    %v896 = vpop.f32.mrb[0].mxu0
    %v897 = vadd.f32 %v764, %v896
    %v898 = vpop.f32.mrb[0].mxu0
    %899 = vmatprep.mubr.f32.mxu0 0.0
    %900 = vmatmul.mubr.f32.gmra.mrb[0].mxu0 %v711
    %v901 = vpop.f32.mrb[0].mxu0
    %v902 = vadd.f32 %v764, %v901
    %v903 = vpop.f32.mrb[0].mxu0
    %904 = vmatprep.mubr.f32.mxu0 0.0
    %905 = vmatmul.mubr.f32.gmra.mrb[0].mxu0 %v712
    %v906 = vpop.f32.mrb[0].mxu0
    %v907 = vadd.f32 %v764, %v906
    %v908 = vpop.f32.mrb[0].mxu0
    %909 = vmatprep.mubr.f32.mxu0 0.0
    %910 = vmatmul.mubr.f32.gmra.mrb[0].mxu0 %v713
    %v911 = vpop.f32.mrb[0].mxu0
    %v912 = vadd.f32 %v764, %v911
    %v913 = vpop.f32.mrb[0].mxu0
    %914 = vmatprep.mubr.f32.mxu0 0.0
    %915 = vmatmul.mubr.f32.gmra.mrb[0].mxu0 %v714
    %v916 = vpop.f32.mrb[0].mxu0
    %v917 = vadd.f32 %v764, %v916
    %v918 = vpop.f32.mrb[0].mxu0
    %919 = vmatprep.mubr.f32.mxu0 0.0
    %920 = vmatmul.mubr.f32.gmra.mrb[0].mxu0 %v715
    %v921 = vpop.f32.mrb[0].mxu0
    %v922 = vadd.f32 %v764, %v921
    %v923 = vpop.f32.mrb[0].mxu0
    %924 = vmatprep.mubr.f32.mxu0 0.0
    %925 = vmatmul.mubr.f32.gmra.mrb[0].mxu0 %v716
    %v926 = vpop.f32.mrb[0].mxu0
    %v927 = vadd.f32 %v764, %v926
    %v928 = vpop.f32.mrb[0].mxu0
    %929 = vmatprep.mubr.f32.mxu0 0.0
    %930 = vmatmul.mubr.f32.gmra.mrb[0].mxu0 %v717
    %v931 = vpop.f32.mrb[0].mxu0
    %v932 = vadd.f32 %v764, %v931
    %v933 = vpop.f32.mrb[0].mxu0
    %934 = vmatprep.mubr.f32.mxu0 0.0
    %935 = vmatmul.mubr.f32.gmra.mrb[0].mxu0 %v718
    %v936 = vpop.f32.mrb[0].mxu0
    %v937 = vadd.f32 %v764, %v936
    %v938 = vpop.f32.mrb[0].mxu0
    %939 = vmatprep.mubr.f32.mxu0 0.0
    %940 = vmatmul.mubr.f32.gmra.mrb[0].mxu0 %v719
    %v941 = vpop.f32.mrb[0].mxu0
    %v942 = vadd.f32 %v764, %v941
    %v943 = vpop.f32.mrb[0].mxu0
    %944 = vmatprep.mubr.f32.mxu0 0.0
    %945 = vmatmul.mubr.f32.gmra.mrb[0].mxu0 %v720
    %v946 = vpop.f32.mrb[0].mxu0
    %v947 = vadd.f32 %v764, %v946
    %v948 = vpop.f32.mrb[0].mxu0
    %949 = vmatprep.mubr.f32.mxu0 0.0
    %950 = vmatmul.mubr.f32.gmra.mrb[0].mxu0 %v721
    %v951 = vpop.f32.mrb[0].mxu0
    %v952 = vadd.f32 %v764, %v951
    %v953 = vpop.f32.mrb[0].mxu0
    %954 = vmatprep.mubr.f32.mxu0 0.0
    %955 = vmatmul.mubr.f32.gmra.mrb[0].mxu0 %v722
    %v956 = vpop.f32.mrb[0].mxu0
    %v957 = vadd.f32 %v764, %v956
    %v958 = vpop.f32.mrb[0].mxu0
    %959 = vmatprep.mubr.f32.mxu0 0.0
    %960 = vmatmul.mubr.f32.gmra.mrb[0].mxu0 %v723
    %v961 = vpop.f32.mrb[0].mxu0
    %v962 = vadd.f32 %v764, %v961
    %v963 = vpop.f32.mrb[0].mxu0
    %964 = vmatprep.mubr.f32.mxu0 0.0
    %965 = vmatmul.mubr.f32.gmra.mrb[0].mxu0 %v724
    %v966 = vpop.f32.mrb[0].mxu0
    %v967 = vadd.f32 %v764, %v966
    %v968 = vpop.f32.mrb[0].mxu0
    %969 = vmatprep.mubr.f32.mxu0 0.0
    %970 = vmatmul.mubr.f32.gmra.mrb[0].mxu0 %v725
    %v971 = vpop.f32.mrb[0].mxu0
    %v972 = vadd.f32 %v764, %v971
    %v973 = vpop.f32.mrb[0].mxu0
    %974 = vmatprep.mubr.f32.mxu0 0.0
    %975 = vmatmul.mubr.f32.gmra.mrb[0].mxu0 %v726
    %v976 = vpop.f32.mrb[0].mxu0
    %v977 = vadd.f32 %v764, %v976
    %v978 = vpop.f32.mrb[0].mxu0
    %979 = vmatprep.mubr.f32.mxu0 0.0
    %980 = vmatmul.mubr.f32.gmra.mrb[0].mxu0 %v727
    %v981 = vpop.f32.mrb[0].mxu0
    %v982 = vadd.f32 %v764, %v981
    %v983 = vpop.f32.mrb[0].mxu0
    %984 = vmatprep.mubr.f32.mxu0 0.0
    %985 = vmatmul.mubr.f32.gmra.mrb[0].mxu0 %v728
    %v986 = vpop.f32.mrb[0].mxu0
    %v987 = vadd.f32 %v764, %v986
    %v988 = vpop.f32.mrb[0].mxu0
    %989 = vmatprep.mubr.f32.mxu0 0.0
    %990 = vmatmul.mubr.f32.gmra.mrb[0].mxu0 %v729
    %v991 = vpop.f32.mrb[0].mxu0
    %v992 = vadd.f32 %v764, %v991
    %v993 = vpop.f32.mrb[0].mxu0
    %994 = vmatprep.mubr.f32.mxu0 0.0
    %995 = vmatmul.mubr.f32.gmra.mrb[0].mxu0 %v730
    %v996 = vpop.f32.mrb[0].mxu0
    %v997 = vadd.f32 %v764, %v996
    %v998 = vpop.f32.mrb[0].mxu0
    %999 = vmatprep.mubr.f32.mxu0 0.0
    %1000 = vmatmul.mubr.f32.gmra.mrb[0].mxu0 %v731
    %v1001 = vpop.f32.mrb[0].mxu0
    %v1002 = vadd.f32 %v764, %v1001
    %v1003 = vpop.f32.mrb[0].mxu0
    %1004 = vmatprep.mubr.f32.mxu0 0.0
    %1005 = vmatmul.mubr.f32.gmra.mrb[0].mxu0 %v732
    %v1006 = vpop.f32.mrb[0].mxu0
    %v1007 = vadd.f32 %v764, %v1006
    %v1008 = vpop.f32.mrb[0].mxu0
    %1009 = vmatprep.mubr.f32.mxu0 0.0
    %1010 = vmatmul.mubr.f32.gmra.mrb[0].mxu0 %v733
    %v1011 = vpop.f32.mrb[0].mxu0
    %v1012 = vadd.f32 %v764, %v1011
    %v1013 = vpop.f32.mrb[0].mxu0
    %1014 = vmatprep.mubr.f32.mxu0 0.0
    %1015 = vmatmul.mubr.f32.gmra.mrb[0].mxu0 %v734
    %v1016 = vpop.f32.mrb[0].mxu0
    %v1017 = vadd.f32 %v764, %v1016
    %v1018 = vpop.f32.mrb[0].mxu0
    %1019 = vmatprep.mubr.f32.mxu0 0.0
    %1020 = vmatmul.mubr.f32.gmra.mrb[0].mxu0 %v735
    %v1021 = vpop.f32.mrb[0].mxu0
    %v1022 = vadd.f32 %v764, %v1021
    %v1023 = vpop.f32.mrb[0].mxu0
    %1024 = vmatprep.mubr.f32.mxu0 0.0
    %1025 = vmatmul.mubr.f32.gmra.mrb[0].mxu0 %v736
    %v1026 = vpop.f32.mrb[0].mxu0
    %v1027 = vadd.f32 %v764, %v1026
    %v1028 = vpop.f32.mrb[0].mxu0
    %1029 = vmatprep.mubr.f32.mxu0 0.0
    %1030 = vmatmul.mubr.f32.gmra.mrb[0].mxu0 %v737
    %v1031 = vpop.f32.mrb[0].mxu0
    %v1032 = vadd.f32 %v764, %v1031
    %v1033 = vpop.f32.mrb[0].mxu0
    %1034 = vmatprep.mubr.f32.mxu0 0.0
    %1035 = vmatmul.mubr.f32.gmra.mrb[0].mxu0 %v738
    %v1036 = vpop.f32.mrb[0].mxu0
    %v1037 = vadd.f32 %v764, %v1036
    %v1038 = vpop.f32.mrb[0].mxu0
    %1039 = vmatprep.mubr.f32.mxu0 0.0
    %1040 = vmatmul.mubr.f32.gmra.mrb[0].mxu0 %v739
    %v1041 = vpop.f32.mrb[0].mxu0
    %v1042 = vadd.f32 %v764, %v1041
    %v1043 = vpop.f32.mrb[0].mxu0
    %1044 = vmatprep.mubr.f32.mxu0 0.0
    %1045 = vmatmul.mubr.f32.gmra.mrb[0].mxu0 %v740
    %v1046 = vpop.f32.mrb[0].mxu0
    %v1047 = vadd.f32 %v764, %v1046
    %v1048 = vpop.f32.mrb[0].mxu0
    %1049 = vmatprep.mubr.f32.mxu0 0.0
    %1050 = vmatmul.mubr.f32.gmra.mrb[0].mxu0 %v741
    %v1051 = vpop.f32.mrb[0].mxu0
    %v1052 = vadd.f32 %v764, %v1051
    %v1053 = vpop.f32.mrb[0].mxu0
    %1054 = vmatprep.mubr.f32.mxu0 0.0
    %1055 = vmatmul.mubr.f32.gmra.mrb[0].mxu0 %v742
    %v1056 = vpop.f32.mrb[0].mxu0
    %v1057 = vadd.f32 %v764, %v1056
    %v1058 = vpop.f32.mrb[0].mxu0
    %1059 = vmatprep.mubr.f32.mxu0 0.0
    %1060 = vmatmul.mubr.f32.gmra.mrb[0].mxu0 %v743
    %v1061 = vpop.f32.mrb[0].mxu0
    %v1062 = vadd.f32 %v764, %v1061
    %v1063 = vpop.f32.mrb[0].mxu0
    %1064 = vmatprep.mubr.f32.mxu0 0.0
    %1065 = vmatmul.mubr.f32.gmra.mrb[0].mxu0 %v744
    %v1066 = vpop.f32.mrb[0].mxu0
    %v1067 = vadd.f32 %v764, %v1066
    %v1068 = vpop.f32.mrb[0].mxu0
    %1069 = vmatprep.mubr.f32.mxu0 0.0
    %1070 = vmatmul.mubr.f32.gmra.mrb[0].mxu0 %v745
    %v1071 = vpop.f32.mrb[0].mxu0
    %v1072 = vadd.f32 %v764, %v1071
    %v1073 = vpop.f32.mrb[0].mxu0
    %1074 = vmatprep.mubr.f32.mxu0 0.0
    %1075 = vmatmul.mubr.f32.gmra.mrb[0].mxu0 %v746
    %v1076 = vpop.f32.mrb[0].mxu0
    %v1077 = vadd.f32 %v764, %v1076
    %v1078 = vpop.f32.mrb[0].mxu0
    %1079 = vmatprep.mubr.f32.mxu0 0.0
    %1080 = vmatmul.mubr.f32.gmra.mrb[0].mxu0 %v747
    %v1081 = vpop.f32.mrb[0].mxu0
    %v1082 = vadd.f32 %v764, %v1081
    %v1083 = vpop.f32.mrb[0].mxu0
    %1084 = vmatprep.mubr.f32.mxu0 0.0
    %1085 = vmatmul.mubr.f32.gmra.mrb[0].mxu0 %v748
    %v1086 = vpop.f32.mrb[0].mxu0
    %v1087 = vadd.f32 %v764, %v1086
    %v1088 = vpop.f32.mrb[0].mxu0
    %1089 = vmatprep.mubr.f32.mxu0 0.0
    %1090 = vmatmul.mubr.f32.gmra.mrb[0].mxu0 %v749
    %v1091 = vpop.f32.mrb[0].mxu0
    %v1092 = vadd.f32 %v764, %v1091
    %v1093 = vpop.f32.mrb[0].mxu0
    %1094 = vmatprep.mubr.f32.mxu0 0.0
    %1095 = vmatmul.mubr.f32.gmra.mrb[0].mxu0 %v750
    %v1096 = vpop.f32.mrb[0].mxu0
    %v1097 = vadd.f32 %v764, %v1096
    %v1098 = vpop.f32.mrb[0].mxu0
    %1099 = vmatprep.mubr.f32.mxu0 0.0
    %1100 = vmatmul.mubr.f32.gmra.mrb[0].mxu0 %v751
    %v1101 = vpop.f32.mrb[0].mxu0
    %v1102 = vadd.f32 %v764, %v1101
    %v1103 = vpop.f32.mrb[0].mxu0
    %1104 = vmatprep.mubr.f32.mxu0 0.0
    %1105 = vmatmul.mubr.f32.gmra.mrb[0].mxu0 %v752
    %v1106 = vpop.f32.mrb[0].mxu0
    %v1107 = vadd.f32 %v764, %v1106
    %v1108 = vpop.f32.mrb[0].mxu0
    %1109 = vmatprep.mubr.f32.mxu0 0.0
    %1110 = vmatmul.mubr.f32.gmra.mrb[0].mxu0 %v753
    %v1111 = vpop.f32.mrb[0].mxu0
    %v1112 = vadd.f32 %v764, %v1111
    %v1113 = vpop.f32.mrb[0].mxu0
    %1114 = vmatprep.mubr.f32.mxu0 0.0
    %1115 = vmatmul.mubr.f32.gmra.mrb[0].mxu0 %v754
    %v1116 = vpop.f32.mrb[0].mxu0
    %v1117 = vadd.f32 %v764, %v1116
    %v1118 = vpop.f32.mrb[0].mxu0
    %1119 = vmatprep.mubr.f32.mxu0 0.0
    %1120 = vmatmul.mubr.f32.gmra.mrb[0].mxu0 %v755
    %v1121 = vpop.f32.mrb[0].mxu0
    %v1122 = vadd.f32 %v764, %v1121
    %v1123 = vpop.f32.mrb[0].mxu0
    %1124 = vmatprep.mubr.f32.mxu0 0.0
    %1125 = vmatmul.mubr.f32.gmra.mrb[0].mxu0 %v756
    %v1126 = vpop.f32.mrb[0].mxu0
    %v1127 = vadd.f32 %v764, %v1126
    %v1128 = vpop.f32.mrb[0].mxu0
    %1129 = vmatprep.mubr.f32.mxu0 0.0
    %1130 = vmatmul.mubr.f32.gmra.mrb[0].mxu0 %v757
    %v1131 = vpop.f32.mrb[0].mxu0
    %v1132 = vadd.f32 %v764, %v1131
    %v1133 = vpop.f32.mrb[0].mxu0
    %1134 = vmatprep.mubr.f32.mxu0 0.0
    %1135 = vmatmul.mubr.f32.gmra.mrb[0].mxu0 %v758
    %v1136 = vpop.f32.mrb[0].mxu0
    %v1137 = vadd.f32 %v764, %v1136
    %v1138 = vpop.f32.mrb[0].mxu0
    %1139 = vmatprep.mubr.f32.mxu0 0.0
    %1140 = vmatmul.mubr.f32.gmra.mrb[0].mxu0 %v759
    %v1141 = vpop.f32.mrb[0].mxu0
    %v1142 = vadd.f32 %v764, %v1141
    %v1143 = vpop.f32.mrb[0].mxu0
    %1144 = vmatprep.mubr.f32.mxu0 0.0
    %1145 = vmatmul.mubr.f32.gmra.mrb[0].mxu0 %v760
    %v1146 = vpop.f32.mrb[0].mxu0
    %v1147 = vadd.f32 %v764, %v1146
    %v1148 = vpop.f32.mrb[0].mxu0
    %1149 = vdwg.mxu0
    %v1150 = vmax.f32 %v832, 0.0
    %v1151 = vmax.f32 %v837, 0.0
    %v1152 = vmax.f32 %v842, 0.0
    %v1153 = vmax.f32 %v847, 0.0
    %v1154 = vmax.f32 %v852, 0.0
    %v1155 = vmax.f32 %v857, 0.0
    %v1156 = vmax.f32 %v862, 0.0
    %v1157 = vmax.f32 %v867, 0.0
    %v1158 = vmax.f32 %v872, 0.0
    %v1159 = vmax.f32 %v877, 0.0
    %v1160 = vmax.f32 %v882, 0.0
    %v1161 = vmax.f32 %v887, 0.0
    %v1162 = vmax.f32 %v892, 0.0
    %v1163 = vmax.f32 %v897, 0.0
    %v1164 = vmax.f32 %v902, 0.0
    %v1165 = vmax.f32 %v907, 0.0
    %v1166 = vmax.f32 %v912, 0.0
    %v1167 = vmax.f32 %v917, 0.0
    %v1168 = vmax.f32 %v922, 0.0
    %v1169 = vmax.f32 %v927, 0.0
    %v1170 = vmax.f32 %v932, 0.0
    %v1171 = vmax.f32 %v937, 0.0
    %v1172 = vmax.f32 %v942, 0.0
    %v1173 = vmax.f32 %v947, 0.0
    %v1174 = vmax.f32 %v952, 0.0
    %v1175 = vmax.f32 %v957, 0.0
    %v1176 = vmax.f32 %v962, 0.0
    %v1177 = vmax.f32 %v967, 0.0
    %v1178 = vmax.f32 %v972, 0.0
    %v1179 = vmax.f32 %v977, 0.0
    %v1180 = vmax.f32 %v982, 0.0
    %v1181 = vmax.f32 %v987, 0.0
    %v1182 = vmax.f32 %v992, 0.0
    %v1183 = vmax.f32 %v997, 0.0
    %v1184 = vmax.f32 %v1002, 0.0
    %v1185 = vmax.f32 %v1007, 0.0
    %v1186 = vmax.f32 %v1012, 0.0
    %v1187 = vmax.f32 %v1017, 0.0
    %v1188 = vmax.f32 %v1022, 0.0
    %v1189 = vmax.f32 %v1027, 0.0
    %v1190 = vmax.f32 %v1032, 0.0
    %v1191 = vmax.f32 %v1037, 0.0
    %v1192 = vmax.f32 %v1042, 0.0
    %v1193 = vmax.f32 %v1047, 0.0
    %v1194 = vmax.f32 %v1052, 0.0
    %v1195 = vmax.f32 %v1057, 0.0
    %v1196 = vmax.f32 %v1062, 0.0
    %v1197 = vmax.f32 %v1067, 0.0
    %v1198 = vmax.f32 %v1072, 0.0
    %v1199 = vmax.f32 %v1077, 0.0
    %v1200 = vmax.f32 %v1082, 0.0
    %v1201 = vmax.f32 %v1087, 0.0
    %v1202 = vmax.f32 %v1092, 0.0
    %v1203 = vmax.f32 %v1097, 0.0
    %v1204 = vmax.f32 %v1102, 0.0
    %v1205 = vmax.f32 %v1107, 0.0
    %v1206 = vmax.f32 %v1112, 0.0
    %v1207 = vmax.f32 %v1117, 0.0
    %v1208 = vmax.f32 %v1122, 0.0
    %v1209 = vmax.f32 %v1127, 0.0
    %v1210 = vmax.f32 %v1132, 0.0
    %v1211 = vmax.f32 %v1137, 0.0
    %v1212 = vmax.f32 %v1142, 0.0
    %v1213 = vmax.f32 %v1147, 0.0
    %v1214 = vlaneseq
    %v1215 = vshrl.u32 %v1214, 7
    %v1216 = vsub.s32 0, %v1215
    %v1217 = vrot.slane %v114, %v1216
    %1218 = vmatprep.subr.mxu0 0.0
    %1219 = vmatpush1.msra.mxu0 %v98
    %1220 = vmatprep.subr.mxu0 0.0
    %1221 = vmatpush1.msra.mxu0 %v99
    %1222 = vmatprep.subr.mxu0 0.0
    %1223 = vmatpush1.msra.mxu0 %v100
    %1224 = vmatprep.subr.mxu0 0.0
    %1225 = vmatpush1.msra.mxu0 %v101
    %1226 = vmatprep.subr.mxu0 0.0
    %1227 = vmatpush1.msra.mxu0 %v102
    %1228 = vmatprep.subr.mxu0 0.0
    %1229 = vmatpush1.msra.mxu0 %v103
    %1230 = vmatprep.subr.mxu0 0.0
    %1231 = vmatpush1.msra.mxu0 %v104
    %1232 = vmatprep.subr.mxu0 0.0
    %1233 = vmatpush1.msra.mxu0 %v105
    %1234 = vmatprep.subr.mxu0 0.0
    %1235 = vmatpush1.msra.mxu0 %v106
    %1236 = vmatprep.subr.mxu0 0.0
    %1237 = vmatpush1.msra.mxu0 %v107
    %1238 = vmatprep.subr.mxu0 0.0
    %1239 = vmatpush1.msra.mxu0 %v108
    %1240 = vmatprep.subr.mxu0 0.0
    %1241 = vmatpush1.msra.mxu0 %v109
    %1242 = vmatprep.subr.mxu0 0.0
    %1243 = vmatpush1.msra.mxu0 %v110
    %1244 = vmatprep.subr.mxu0 0.0
    %1245 = vmatpush1.msra.mxu0 %v111
    %1246 = vmatprep.subr.mxu0 0.0
    %1247 = vmatpush1.msra.mxu0 %v112
    %1248 = vmatprep.subr.mxu0 0.0
    %1249 = vmatpush1.msra.mxu0 %v113
    %1250 = vmatprep.subr.mxu0 0.0
    %1251 = vmatpush1.msra.mxu0 0.0
    %1252 = vmatprep.subr.mxu0 0.0
    %1253 = vmatpush1.msra.mxu0 0.0
    %1254 = vmatprep.subr.mxu0 0.0
    %1255 = vmatpush1.msra.mxu0 0.0
    %1256 = vmatprep.subr.mxu0 0.0
    %1257 = vmatpush1.msra.mxu0 0.0
    %1258 = vmatprep.subr.mxu0 0.0
    %1259 = vmatpush1.msra.mxu0 0.0
    %1260 = vmatprep.subr.mxu0 0.0
    %1261 = vmatpush1.msra.mxu0 0.0
    %1262 = vmatprep.subr.mxu0 0.0
    %1263 = vmatpush1.msra.mxu0 0.0
    %1264 = vmatprep.subr.mxu0 0.0
    %1265 = vmatpush1.msra.mxu0 0.0
    %1266 = vmatprep.subr.mxu0 0.0
    %1267 = vmatpush1.msra.mxu0 0.0
    %1268 = vmatprep.subr.mxu0 0.0
    %1269 = vmatpush1.msra.mxu0 0.0
    %1270 = vmatprep.subr.mxu0 0.0
    %1271 = vmatpush1.msra.mxu0 0.0
    %1272 = vmatprep.subr.mxu0 0.0
    %1273 = vmatpush1.msra.mxu0 0.0
    %1274 = vmatprep.subr.mxu0 0.0
    %1275 = vmatpush1.msra.mxu0 0.0
    %1276 = vmatprep.subr.mxu0 0.0
    %1277 = vmatpush1.msra.mxu0 0.0
    %1278 = vmatprep.subr.mxu0 0.0
    %1279 = vmatpush1.msra.mxu0 0.0
    %1280 = vmatprep.subr.mxu0 0.0
    %1281 = vmatpush1.msra.mxu0 0.0
    %1282 = vmatprep.mubr.f32.mxu0 0.0
    %1283 = vmatmul.mubr.f32.gmra.mrb[0].mxu0 %v1150
    %v1284 = vpop.f32.mrb[0].mxu0
    %v1285 = vadd.f32 %v1217, %v1284
    %v1286 = vpop.f32.mrb[0].mxu0
    %1287 = vmatprep.mubr.f32.mxu0 0.0
    %1288 = vmatmul.mubr.f32.gmra.mrb[0].mxu0 %v1151
    %v1289 = vpop.f32.mrb[0].mxu0
    %v1290 = vadd.f32 %v1217, %v1289
    %v1291 = vpop.f32.mrb[0].mxu0
    %1292 = vmatprep.mubr.f32.mxu0 0.0
    %1293 = vmatmul.mubr.f32.gmra.mrb[0].mxu0 %v1152
    %v1294 = vpop.f32.mrb[0].mxu0
    %v1295 = vadd.f32 %v1217, %v1294
    %v1296 = vpop.f32.mrb[0].mxu0
    %1297 = vmatprep.mubr.f32.mxu0 0.0
    %1298 = vmatmul.mubr.f32.gmra.mrb[0].mxu0 %v1153
    %v1299 = vpop.f32.mrb[0].mxu0
    %v1300 = vadd.f32 %v1217, %v1299
    %v1301 = vpop.f32.mrb[0].mxu0
    %1302 = vmatprep.mubr.f32.mxu0 0.0
    %1303 = vmatmul.mubr.f32.gmra.mrb[0].mxu0 %v1154
    %v1304 = vpop.f32.mrb[0].mxu0
    %v1305 = vadd.f32 %v1217, %v1304
    %v1306 = vpop.f32.mrb[0].mxu0
    %1307 = vmatprep.mubr.f32.mxu0 0.0
    %1308 = vmatmul.mubr.f32.gmra.mrb[0].mxu0 %v1155
    %v1309 = vpop.f32.mrb[0].mxu0
    %v1310 = vadd.f32 %v1217, %v1309
    %v1311 = vpop.f32.mrb[0].mxu0
    %1312 = vmatprep.mubr.f32.mxu0 0.0
    %1313 = vmatmul.mubr.f32.gmra.mrb[0].mxu0 %v1156
    %v1314 = vpop.f32.mrb[0].mxu0
    %v1315 = vadd.f32 %v1217, %v1314
    %v1316 = vpop.f32.mrb[0].mxu0
    %1317 = vmatprep.mubr.f32.mxu0 0.0
    %1318 = vmatmul.mubr.f32.gmra.mrb[0].mxu0 %v1157
    %v1319 = vpop.f32.mrb[0].mxu0
    %v1320 = vadd.f32 %v1217, %v1319
    %v1321 = vpop.f32.mrb[0].mxu0
    %1322 = vmatprep.mubr.f32.mxu0 0.0
    %1323 = vmatmul.mubr.f32.gmra.mrb[0].mxu0 %v1158
    %v1324 = vpop.f32.mrb[0].mxu0
    %v1325 = vadd.f32 %v1217, %v1324
    %v1326 = vpop.f32.mrb[0].mxu0
    %1327 = vmatprep.mubr.f32.mxu0 0.0
    %1328 = vmatmul.mubr.f32.gmra.mrb[0].mxu0 %v1159
    %v1329 = vpop.f32.mrb[0].mxu0
    %v1330 = vadd.f32 %v1217, %v1329
    %v1331 = vpop.f32.mrb[0].mxu0
    %1332 = vmatprep.mubr.f32.mxu0 0.0
    %1333 = vmatmul.mubr.f32.gmra.mrb[0].mxu0 %v1160
    %v1334 = vpop.f32.mrb[0].mxu0
    %v1335 = vadd.f32 %v1217, %v1334
    %v1336 = vpop.f32.mrb[0].mxu0
    %1337 = vmatprep.mubr.f32.mxu0 0.0
    %1338 = vmatmul.mubr.f32.gmra.mrb[0].mxu0 %v1161
    %v1339 = vpop.f32.mrb[0].mxu0
    %v1340 = vadd.f32 %v1217, %v1339
    %v1341 = vpop.f32.mrb[0].mxu0
    %1342 = vmatprep.mubr.f32.mxu0 0.0
    %1343 = vmatmul.mubr.f32.gmra.mrb[0].mxu0 %v1162
    %v1344 = vpop.f32.mrb[0].mxu0
    %v1345 = vadd.f32 %v1217, %v1344
    %v1346 = vpop.f32.mrb[0].mxu0
    %1347 = vmatprep.mubr.f32.mxu0 0.0
    %1348 = vmatmul.mubr.f32.gmra.mrb[0].mxu0 %v1163
    %v1349 = vpop.f32.mrb[0].mxu0
    %v1350 = vadd.f32 %v1217, %v1349
    %v1351 = vpop.f32.mrb[0].mxu0
    %1352 = vmatprep.mubr.f32.mxu0 0.0
    %1353 = vmatmul.mubr.f32.gmra.mrb[0].mxu0 %v1164
    %v1354 = vpop.f32.mrb[0].mxu0
    %v1355 = vadd.f32 %v1217, %v1354
    %v1356 = vpop.f32.mrb[0].mxu0
    %1357 = vmatprep.mubr.f32.mxu0 0.0
    %1358 = vmatmul.mubr.f32.gmra.mrb[0].mxu0 %v1165
    %v1359 = vpop.f32.mrb[0].mxu0
    %v1360 = vadd.f32 %v1217, %v1359
    %v1361 = vpop.f32.mrb[0].mxu0
    %1362 = vmatprep.mubr.f32.mxu0 0.0
    %1363 = vmatmul.mubr.f32.gmra.mrb[0].mxu0 %v1166
    %v1364 = vpop.f32.mrb[0].mxu0
    %v1365 = vadd.f32 %v1217, %v1364
    %v1366 = vpop.f32.mrb[0].mxu0
    %1367 = vmatprep.mubr.f32.mxu0 0.0
    %1368 = vmatmul.mubr.f32.gmra.mrb[0].mxu0 %v1167
    %v1369 = vpop.f32.mrb[0].mxu0
    %v1370 = vadd.f32 %v1217, %v1369
    %v1371 = vpop.f32.mrb[0].mxu0
    %1372 = vmatprep.mubr.f32.mxu0 0.0
    %1373 = vmatmul.mubr.f32.gmra.mrb[0].mxu0 %v1168
    %v1374 = vpop.f32.mrb[0].mxu0
    %v1375 = vadd.f32 %v1217, %v1374
    %v1376 = vpop.f32.mrb[0].mxu0
    %1377 = vmatprep.mubr.f32.mxu0 0.0
    %1378 = vmatmul.mubr.f32.gmra.mrb[0].mxu0 %v1169
    %v1379 = vpop.f32.mrb[0].mxu0
    %v1380 = vadd.f32 %v1217, %v1379
    %v1381 = vpop.f32.mrb[0].mxu0
    %1382 = vmatprep.mubr.f32.mxu0 0.0
    %1383 = vmatmul.mubr.f32.gmra.mrb[0].mxu0 %v1170
    %v1384 = vpop.f32.mrb[0].mxu0
    %v1385 = vadd.f32 %v1217, %v1384
    %v1386 = vpop.f32.mrb[0].mxu0
    %1387 = vmatprep.mubr.f32.mxu0 0.0
    %1388 = vmatmul.mubr.f32.gmra.mrb[0].mxu0 %v1171
    %v1389 = vpop.f32.mrb[0].mxu0
    %v1390 = vadd.f32 %v1217, %v1389
    %v1391 = vpop.f32.mrb[0].mxu0
    %1392 = vmatprep.mubr.f32.mxu0 0.0
    %1393 = vmatmul.mubr.f32.gmra.mrb[0].mxu0 %v1172
    %v1394 = vpop.f32.mrb[0].mxu0
    %v1395 = vadd.f32 %v1217, %v1394
    %v1396 = vpop.f32.mrb[0].mxu0
    %1397 = vmatprep.mubr.f32.mxu0 0.0
    %1398 = vmatmul.mubr.f32.gmra.mrb[0].mxu0 %v1173
    %v1399 = vpop.f32.mrb[0].mxu0
    %v1400 = vadd.f32 %v1217, %v1399
    %v1401 = vpop.f32.mrb[0].mxu0
    %1402 = vmatprep.mubr.f32.mxu0 0.0
    %1403 = vmatmul.mubr.f32.gmra.mrb[0].mxu0 %v1174
    %v1404 = vpop.f32.mrb[0].mxu0
    %v1405 = vadd.f32 %v1217, %v1404
    %v1406 = vpop.f32.mrb[0].mxu0
    %1407 = vmatprep.mubr.f32.mxu0 0.0
    %1408 = vmatmul.mubr.f32.gmra.mrb[0].mxu0 %v1175
    %v1409 = vpop.f32.mrb[0].mxu0
    %v1410 = vadd.f32 %v1217, %v1409
    %v1411 = vpop.f32.mrb[0].mxu0
    %1412 = vmatprep.mubr.f32.mxu0 0.0
    %1413 = vmatmul.mubr.f32.gmra.mrb[0].mxu0 %v1176
    %v1414 = vpop.f32.mrb[0].mxu0
    %v1415 = vadd.f32 %v1217, %v1414
    %v1416 = vpop.f32.mrb[0].mxu0
    %1417 = vmatprep.mubr.f32.mxu0 0.0
    %1418 = vmatmul.mubr.f32.gmra.mrb[0].mxu0 %v1177
    %v1419 = vpop.f32.mrb[0].mxu0
    %v1420 = vadd.f32 %v1217, %v1419
    %v1421 = vpop.f32.mrb[0].mxu0
    %1422 = vmatprep.mubr.f32.mxu0 0.0
    %1423 = vmatmul.mubr.f32.gmra.mrb[0].mxu0 %v1178
    %v1424 = vpop.f32.mrb[0].mxu0
    %v1425 = vadd.f32 %v1217, %v1424
    %v1426 = vpop.f32.mrb[0].mxu0
    %1427 = vmatprep.mubr.f32.mxu0 0.0
    %1428 = vmatmul.mubr.f32.gmra.mrb[0].mxu0 %v1179
    %v1429 = vpop.f32.mrb[0].mxu0
    %v1430 = vadd.f32 %v1217, %v1429
    %v1431 = vpop.f32.mrb[0].mxu0
    %1432 = vmatprep.mubr.f32.mxu0 0.0
    %1433 = vmatmul.mubr.f32.gmra.mrb[0].mxu0 %v1180
    %v1434 = vpop.f32.mrb[0].mxu0
    %v1435 = vadd.f32 %v1217, %v1434
    %v1436 = vpop.f32.mrb[0].mxu0
    %1437 = vmatprep.mubr.f32.mxu0 0.0
    %1438 = vmatmul.mubr.f32.gmra.mrb[0].mxu0 %v1181
    %v1439 = vpop.f32.mrb[0].mxu0
    %v1440 = vadd.f32 %v1217, %v1439
    %v1441 = vpop.f32.mrb[0].mxu0
    %1442 = vmatprep.mubr.f32.mxu0 0.0
    %1443 = vmatmul.mubr.f32.gmra.mrb[0].mxu0 %v1182
    %v1444 = vpop.f32.mrb[0].mxu0
    %v1445 = vadd.f32 %v1217, %v1444
    %v1446 = vpop.f32.mrb[0].mxu0
    %1447 = vmatprep.mubr.f32.mxu0 0.0
    %1448 = vmatmul.mubr.f32.gmra.mrb[0].mxu0 %v1183
    %v1449 = vpop.f32.mrb[0].mxu0
    %v1450 = vadd.f32 %v1217, %v1449
    %v1451 = vpop.f32.mrb[0].mxu0
    %1452 = vmatprep.mubr.f32.mxu0 0.0
    %1453 = vmatmul.mubr.f32.gmra.mrb[0].mxu0 %v1184
    %v1454 = vpop.f32.mrb[0].mxu0
    %v1455 = vadd.f32 %v1217, %v1454
    %v1456 = vpop.f32.mrb[0].mxu0
    %1457 = vmatprep.mubr.f32.mxu0 0.0
    %1458 = vmatmul.mubr.f32.gmra.mrb[0].mxu0 %v1185
    %v1459 = vpop.f32.mrb[0].mxu0
    %v1460 = vadd.f32 %v1217, %v1459
    %v1461 = vpop.f32.mrb[0].mxu0
    %1462 = vmatprep.mubr.f32.mxu0 0.0
    %1463 = vmatmul.mubr.f32.gmra.mrb[0].mxu0 %v1186
    %v1464 = vpop.f32.mrb[0].mxu0
    %v1465 = vadd.f32 %v1217, %v1464
    %v1466 = vpop.f32.mrb[0].mxu0
    %1467 = vmatprep.mubr.f32.mxu0 0.0
    %1468 = vmatmul.mubr.f32.gmra.mrb[0].mxu0 %v1187
    %v1469 = vpop.f32.mrb[0].mxu0
    %v1470 = vadd.f32 %v1217, %v1469
    %v1471 = vpop.f32.mrb[0].mxu0
    %1472 = vmatprep.mubr.f32.mxu0 0.0
    %1473 = vmatmul.mubr.f32.gmra.mrb[0].mxu0 %v1188
    %v1474 = vpop.f32.mrb[0].mxu0
    %v1475 = vadd.f32 %v1217, %v1474
    %v1476 = vpop.f32.mrb[0].mxu0
    %1477 = vmatprep.mubr.f32.mxu0 0.0
    %1478 = vmatmul.mubr.f32.gmra.mrb[0].mxu0 %v1189
    %v1479 = vpop.f32.mrb[0].mxu0
    %v1480 = vadd.f32 %v1217, %v1479
    %v1481 = vpop.f32.mrb[0].mxu0
    %1482 = vmatprep.mubr.f32.mxu0 0.0
    %1483 = vmatmul.mubr.f32.gmra.mrb[0].mxu0 %v1190
    %v1484 = vpop.f32.mrb[0].mxu0
    %v1485 = vadd.f32 %v1217, %v1484
    %v1486 = vpop.f32.mrb[0].mxu0
    %1487 = vmatprep.mubr.f32.mxu0 0.0
    %1488 = vmatmul.mubr.f32.gmra.mrb[0].mxu0 %v1191
    %v1489 = vpop.f32.mrb[0].mxu0
    %v1490 = vadd.f32 %v1217, %v1489
    %v1491 = vpop.f32.mrb[0].mxu0
    %1492 = vmatprep.mubr.f32.mxu0 0.0
    %1493 = vmatmul.mubr.f32.gmra.mrb[0].mxu0 %v1192
    %v1494 = vpop.f32.mrb[0].mxu0
    %v1495 = vadd.f32 %v1217, %v1494
    %v1496 = vpop.f32.mrb[0].mxu0
    %1497 = vmatprep.mubr.f32.mxu0 0.0
    %1498 = vmatmul.mubr.f32.gmra.mrb[0].mxu0 %v1193
    %v1499 = vpop.f32.mrb[0].mxu0
    %v1500 = vadd.f32 %v1217, %v1499
    %v1501 = vpop.f32.mrb[0].mxu0
    %1502 = vmatprep.mubr.f32.mxu0 0.0
    %1503 = vmatmul.mubr.f32.gmra.mrb[0].mxu0 %v1194
    %v1504 = vpop.f32.mrb[0].mxu0
    %v1505 = vadd.f32 %v1217, %v1504
    %v1506 = vpop.f32.mrb[0].mxu0
    %1507 = vmatprep.mubr.f32.mxu0 0.0
    %1508 = vmatmul.mubr.f32.gmra.mrb[0].mxu0 %v1195
    %v1509 = vpop.f32.mrb[0].mxu0
    %v1510 = vadd.f32 %v1217, %v1509
    %v1511 = vpop.f32.mrb[0].mxu0
    %1512 = vmatprep.mubr.f32.mxu0 0.0
    %1513 = vmatmul.mubr.f32.gmra.mrb[0].mxu0 %v1196
    %v1514 = vpop.f32.mrb[0].mxu0
    %v1515 = vadd.f32 %v1217, %v1514
    %v1516 = vpop.f32.mrb[0].mxu0
    %1517 = vmatprep.mubr.f32.mxu0 0.0
    %1518 = vmatmul.mubr.f32.gmra.mrb[0].mxu0 %v1197
    %v1519 = vpop.f32.mrb[0].mxu0
    %v1520 = vadd.f32 %v1217, %v1519
    %v1521 = vpop.f32.mrb[0].mxu0
    %1522 = vmatprep.mubr.f32.mxu0 0.0
    %1523 = vmatmul.mubr.f32.gmra.mrb[0].mxu0 %v1198
    %v1524 = vpop.f32.mrb[0].mxu0
    %v1525 = vadd.f32 %v1217, %v1524
    %v1526 = vpop.f32.mrb[0].mxu0
    %1527 = vmatprep.mubr.f32.mxu0 0.0
    %1528 = vmatmul.mubr.f32.gmra.mrb[0].mxu0 %v1199
    %v1529 = vpop.f32.mrb[0].mxu0
    %v1530 = vadd.f32 %v1217, %v1529
    %v1531 = vpop.f32.mrb[0].mxu0
    %1532 = vmatprep.mubr.f32.mxu0 0.0
    %1533 = vmatmul.mubr.f32.gmra.mrb[0].mxu0 %v1200
    %v1534 = vpop.f32.mrb[0].mxu0
    %v1535 = vadd.f32 %v1217, %v1534
    %v1536 = vpop.f32.mrb[0].mxu0
    %1537 = vmatprep.mubr.f32.mxu0 0.0
    %1538 = vmatmul.mubr.f32.gmra.mrb[0].mxu0 %v1201
    %v1539 = vpop.f32.mrb[0].mxu0
    %v1540 = vadd.f32 %v1217, %v1539
    %v1541 = vpop.f32.mrb[0].mxu0
    %1542 = vmatprep.mubr.f32.mxu0 0.0
    %1543 = vmatmul.mubr.f32.gmra.mrb[0].mxu0 %v1202
    %v1544 = vpop.f32.mrb[0].mxu0
    %v1545 = vadd.f32 %v1217, %v1544
    %v1546 = vpop.f32.mrb[0].mxu0
    %1547 = vmatprep.mubr.f32.mxu0 0.0
    %1548 = vmatmul.mubr.f32.gmra.mrb[0].mxu0 %v1203
    %v1549 = vpop.f32.mrb[0].mxu0
    %v1550 = vadd.f32 %v1217, %v1549
    %v1551 = vpop.f32.mrb[0].mxu0
    %1552 = vmatprep.mubr.f32.mxu0 0.0
    %1553 = vmatmul.mubr.f32.gmra.mrb[0].mxu0 %v1204
    %v1554 = vpop.f32.mrb[0].mxu0
    %v1555 = vadd.f32 %v1217, %v1554
    %v1556 = vpop.f32.mrb[0].mxu0
    %1557 = vmatprep.mubr.f32.mxu0 0.0
    %1558 = vmatmul.mubr.f32.gmra.mrb[0].mxu0 %v1205
    %v1559 = vpop.f32.mrb[0].mxu0
    %v1560 = vadd.f32 %v1217, %v1559
    %v1561 = vpop.f32.mrb[0].mxu0
    %1562 = vmatprep.mubr.f32.mxu0 0.0
    %1563 = vmatmul.mubr.f32.gmra.mrb[0].mxu0 %v1206
    %v1564 = vpop.f32.mrb[0].mxu0
    %v1565 = vadd.f32 %v1217, %v1564
    %v1566 = vpop.f32.mrb[0].mxu0
    %1567 = vmatprep.mubr.f32.mxu0 0.0
    %1568 = vmatmul.mubr.f32.gmra.mrb[0].mxu0 %v1207
    %v1569 = vpop.f32.mrb[0].mxu0
    %v1570 = vadd.f32 %v1217, %v1569
    %v1571 = vpop.f32.mrb[0].mxu0
    %1572 = vmatprep.mubr.f32.mxu0 0.0
    %1573 = vmatmul.mubr.f32.gmra.mrb[0].mxu0 %v1208
    %v1574 = vpop.f32.mrb[0].mxu0
    %v1575 = vadd.f32 %v1217, %v1574
    %v1576 = vpop.f32.mrb[0].mxu0
    %1577 = vmatprep.mubr.f32.mxu0 0.0
    %1578 = vmatmul.mubr.f32.gmra.mrb[0].mxu0 %v1209
    %v1579 = vpop.f32.mrb[0].mxu0
    %v1580 = vadd.f32 %v1217, %v1579
    %v1581 = vpop.f32.mrb[0].mxu0
    %1582 = vmatprep.mubr.f32.mxu0 0.0
    %1583 = vmatmul.mubr.f32.gmra.mrb[0].mxu0 %v1210
    %v1584 = vpop.f32.mrb[0].mxu0
    %v1585 = vadd.f32 %v1217, %v1584
    %v1586 = vpop.f32.mrb[0].mxu0
    %1587 = vmatprep.mubr.f32.mxu0 0.0
    %1588 = vmatmul.mubr.f32.gmra.mrb[0].mxu0 %v1211
    %v1589 = vpop.f32.mrb[0].mxu0
    %v1590 = vadd.f32 %v1217, %v1589
    %v1591 = vpop.f32.mrb[0].mxu0
    %1592 = vmatprep.mubr.f32.mxu0 0.0
    %1593 = vmatmul.mubr.f32.gmra.mrb[0].mxu0 %v1212
    %v1594 = vpop.f32.mrb[0].mxu0
    %v1595 = vadd.f32 %v1217, %v1594
    %v1596 = vpop.f32.mrb[0].mxu0
    %1597 = vmatprep.mubr.f32.mxu0 0.0
    %1598 = vmatmul.mubr.f32.gmra.mrb[0].mxu0 %v1213
    %v1599 = vpop.f32.mrb[0].mxu0
    %v1600 = vadd.f32 %v1217, %v1599
    %v1601 = vpop.f32.mrb[0].mxu0
    %1602 = vdwg.mxu0
    %1603 = vmax.xlane.f32.xlu0 %v1285
    %v1604 = vpop.xlane.xlu0 %1603
    %1605 = vmax.xlane.f32.xlu0 %v1290
    %v1606 = vpop.xlane.xlu0 %1605
    %1607 = vmax.xlane.f32.xlu0 %v1295
    %v1608 = vpop.xlane.xlu0 %1607
    %1609 = vmax.xlane.f32.xlu0 %v1300
    %v1610 = vpop.xlane.xlu0 %1609
    %1611 = vmax.xlane.f32.xlu0 %v1305
    %v1612 = vpop.xlane.xlu0 %1611
    %1613 = vmax.xlane.f32.xlu0 %v1310
    %v1614 = vpop.xlane.xlu0 %1613
    %1615 = vmax.xlane.f32.xlu0 %v1315
    %v1616 = vpop.xlane.xlu0 %1615
    %1617 = vmax.xlane.f32.xlu0 %v1320
    %v1618 = vpop.xlane.xlu0 %1617
    %1619 = vmax.xlane.f32.xlu0 %v1325
    %v1620 = vpop.xlane.xlu0 %1619
    %1621 = vmax.xlane.f32.xlu0 %v1330
    %v1622 = vpop.xlane.xlu0 %1621
    %1623 = vmax.xlane.f32.xlu0 %v1335
    %v1624 = vpop.xlane.xlu0 %1623
    %1625 = vmax.xlane.f32.xlu0 %v1340
    %v1626 = vpop.xlane.xlu0 %1625
    %1627 = vmax.xlane.f32.xlu0 %v1345
    %v1628 = vpop.xlane.xlu0 %1627
    %1629 = vmax.xlane.f32.xlu0 %v1350
    %v1630 = vpop.xlane.xlu0 %1629
    %1631 = vmax.xlane.f32.xlu0 %v1355
    %v1632 = vpop.xlane.xlu0 %1631
    %1633 = vmax.xlane.f32.xlu0 %v1360
    %v1634 = vpop.xlane.xlu0 %1633
    %1635 = vmax.xlane.f32.xlu0 %v1365
    %v1636 = vpop.xlane.xlu0 %1635
    %1637 = vmax.xlane.f32.xlu0 %v1370
    %v1638 = vpop.xlane.xlu0 %1637
    %1639 = vmax.xlane.f32.xlu0 %v1375
    %v1640 = vpop.xlane.xlu0 %1639
    %1641 = vmax.xlane.f32.xlu0 %v1380
    %v1642 = vpop.xlane.xlu0 %1641
    %1643 = vmax.xlane.f32.xlu0 %v1385
    %v1644 = vpop.xlane.xlu0 %1643
    %1645 = vmax.xlane.f32.xlu0 %v1390
    %v1646 = vpop.xlane.xlu0 %1645
    %1647 = vmax.xlane.f32.xlu0 %v1395
    %v1648 = vpop.xlane.xlu0 %1647
    %1649 = vmax.xlane.f32.xlu0 %v1400
    %v1650 = vpop.xlane.xlu0 %1649
    %1651 = vmax.xlane.f32.xlu0 %v1405
    %v1652 = vpop.xlane.xlu0 %1651
    %1653 = vmax.xlane.f32.xlu0 %v1410
    %v1654 = vpop.xlane.xlu0 %1653
    %1655 = vmax.xlane.f32.xlu0 %v1415
    %v1656 = vpop.xlane.xlu0 %1655
    %1657 = vmax.xlane.f32.xlu0 %v1420
    %v1658 = vpop.xlane.xlu0 %1657
    %1659 = vmax.xlane.f32.xlu0 %v1425
    %v1660 = vpop.xlane.xlu0 %1659
    %1661 = vmax.xlane.f32.xlu0 %v1430
    %v1662 = vpop.xlane.xlu0 %1661
    %1663 = vmax.xlane.f32.xlu0 %v1435
    %v1664 = vpop.xlane.xlu0 %1663
    %1665 = vmax.xlane.f32.xlu0 %v1440
    %v1666 = vpop.xlane.xlu0 %1665
    %1667 = vmax.xlane.f32.xlu0 %v1445
    %v1668 = vpop.xlane.xlu0 %1667
    %1669 = vmax.xlane.f32.xlu0 %v1450
    %v1670 = vpop.xlane.xlu0 %1669
    %1671 = vmax.xlane.f32.xlu0 %v1455
    %v1672 = vpop.xlane.xlu0 %1671
    %1673 = vmax.xlane.f32.xlu0 %v1460
    %v1674 = vpop.xlane.xlu0 %1673
    %1675 = vmax.xlane.f32.xlu0 %v1465
    %v1676 = vpop.xlane.xlu0 %1675
    %1677 = vmax.xlane.f32.xlu0 %v1470
    %v1678 = vpop.xlane.xlu0 %1677
    %1679 = vmax.xlane.f32.xlu0 %v1475
    %v1680 = vpop.xlane.xlu0 %1679
    %1681 = vmax.xlane.f32.xlu0 %v1480
    %v1682 = vpop.xlane.xlu0 %1681
    %1683 = vmax.xlane.f32.xlu0 %v1485
    %v1684 = vpop.xlane.xlu0 %1683
    %1685 = vmax.xlane.f32.xlu0 %v1490
    %v1686 = vpop.xlane.xlu0 %1685
    %1687 = vmax.xlane.f32.xlu0 %v1495
    %v1688 = vpop.xlane.xlu0 %1687
    %1689 = vmax.xlane.f32.xlu0 %v1500
    %v1690 = vpop.xlane.xlu0 %1689
    %1691 = vmax.xlane.f32.xlu0 %v1505
    %v1692 = vpop.xlane.xlu0 %1691
    %1693 = vmax.xlane.f32.xlu0 %v1510
    %v1694 = vpop.xlane.xlu0 %1693
    %1695 = vmax.xlane.f32.xlu0 %v1515
    %v1696 = vpop.xlane.xlu0 %1695
    %1697 = vmax.xlane.f32.xlu0 %v1520
    %v1698 = vpop.xlane.xlu0 %1697
    %1699 = vmax.xlane.f32.xlu0 %v1525
    %v1700 = vpop.xlane.xlu0 %1699
    %1701 = vmax.xlane.f32.xlu0 %v1530
    %v1702 = vpop.xlane.xlu0 %1701
    %1703 = vmax.xlane.f32.xlu0 %v1535
    %v1704 = vpop.xlane.xlu0 %1703
    %1705 = vmax.xlane.f32.xlu0 %v1540
    %v1706 = vpop.xlane.xlu0 %1705
    %1707 = vmax.xlane.f32.xlu0 %v1545
    %v1708 = vpop.xlane.xlu0 %1707
    %1709 = vmax.xlane.f32.xlu0 %v1550
    %v1710 = vpop.xlane.xlu0 %1709
    %1711 = vmax.xlane.f32.xlu0 %v1555
    %v1712 = vpop.xlane.xlu0 %1711
    %1713 = vmax.xlane.f32.xlu0 %v1560
    %v1714 = vpop.xlane.xlu0 %1713
    %1715 = vmax.xlane.f32.xlu0 %v1565
    %v1716 = vpop.xlane.xlu0 %1715
    %1717 = vmax.xlane.f32.xlu0 %v1570
    %v1718 = vpop.xlane.xlu0 %1717
    %1719 = vmax.xlane.f32.xlu0 %v1575
    %v1720 = vpop.xlane.xlu0 %1719
    %1721 = vmax.xlane.f32.xlu0 %v1580
    %v1722 = vpop.xlane.xlu0 %1721
    %1723 = vmax.xlane.f32.xlu0 %v1585
    %v1724 = vpop.xlane.xlu0 %1723
    %1725 = vmax.xlane.f32.xlu0 %v1590
    %v1726 = vpop.xlane.xlu0 %1725
    %1727 = vmax.xlane.f32.xlu0 %v1595
    %v1728 = vpop.xlane.xlu0 %1727
    %1729 = vmax.xlane.f32.xlu0 %v1600
    %v1730 = vpop.xlane.xlu0 %1729
    %v1731 = vsub.f32 %v1285, %v1604
    %v1732 = vsub.f32 %v1290, %v1606
    %v1733 = vsub.f32 %v1295, %v1608
    %v1734 = vsub.f32 %v1300, %v1610
    %v1735 = vsub.f32 %v1305, %v1612
    %v1736 = vsub.f32 %v1310, %v1614
    %v1737 = vsub.f32 %v1315, %v1616
    %v1738 = vsub.f32 %v1320, %v1618
    %v1739 = vsub.f32 %v1325, %v1620
    %v1740 = vsub.f32 %v1330, %v1622
    %v1741 = vsub.f32 %v1335, %v1624
    %v1742 = vsub.f32 %v1340, %v1626
    %v1743 = vsub.f32 %v1345, %v1628
    %v1744 = vsub.f32 %v1350, %v1630
    %v1745 = vsub.f32 %v1355, %v1632
    %v1746 = vsub.f32 %v1360, %v1634
    %v1747 = vsub.f32 %v1365, %v1636
    %v1748 = vsub.f32 %v1370, %v1638
    %v1749 = vsub.f32 %v1375, %v1640
    %v1750 = vsub.f32 %v1380, %v1642
    %v1751 = vsub.f32 %v1385, %v1644
    %v1752 = vsub.f32 %v1390, %v1646
    %v1753 = vsub.f32 %v1395, %v1648
    %v1754 = vsub.f32 %v1400, %v1650
    %v1755 = vsub.f32 %v1405, %v1652
    %v1756 = vsub.f32 %v1410, %v1654
    %v1757 = vsub.f32 %v1415, %v1656
    %v1758 = vsub.f32 %v1420, %v1658
    %v1759 = vsub.f32 %v1425, %v1660
    %v1760 = vsub.f32 %v1430, %v1662
    %v1761 = vsub.f32 %v1435, %v1664
    %v1762 = vsub.f32 %v1440, %v1666
    %v1763 = vsub.f32 %v1445, %v1668
    %v1764 = vsub.f32 %v1450, %v1670
    %v1765 = vsub.f32 %v1455, %v1672
    %v1766 = vsub.f32 %v1460, %v1674
    %v1767 = vsub.f32 %v1465, %v1676
    %v1768 = vsub.f32 %v1470, %v1678
    %v1769 = vsub.f32 %v1475, %v1680
    %v1770 = vsub.f32 %v1480, %v1682
    %v1771 = vsub.f32 %v1485, %v1684
    %v1772 = vsub.f32 %v1490, %v1686
    %v1773 = vsub.f32 %v1495, %v1688
    %v1774 = vsub.f32 %v1500, %v1690
    %v1775 = vsub.f32 %v1505, %v1692
    %v1776 = vsub.f32 %v1510, %v1694
    %v1777 = vsub.f32 %v1515, %v1696
    %v1778 = vsub.f32 %v1520, %v1698
    %v1779 = vsub.f32 %v1525, %v1700
    %v1780 = vsub.f32 %v1530, %v1702
    %v1781 = vsub.f32 %v1535, %v1704
    %v1782 = vsub.f32 %v1540, %v1706
    %v1783 = vsub.f32 %v1545, %v1708
    %v1784 = vsub.f32 %v1550, %v1710
    %v1785 = vsub.f32 %v1555, %v1712
    %v1786 = vsub.f32 %v1560, %v1714
    %v1787 = vsub.f32 %v1565, %v1716
    %v1788 = vsub.f32 %v1570, %v1718
    %v1789 = vsub.f32 %v1575, %v1720
    %v1790 = vsub.f32 %v1580, %v1722
    %v1791 = vsub.f32 %v1585, %v1724
    %v1792 = vsub.f32 %v1590, %v1726
    %v1793 = vsub.f32 %v1595, %v1728
    %v1794 = vsub.f32 %v1600, %v1730
    %v1795 = vmul.f32 %v1731, 1.442695
    %v1796 = vpow.pop %v1795
    %v1797 = vmul.f32 %v1732, 1.442695
    %v1798 = vpow.pop %v1797
    %v1799 = vmul.f32 %v1733, 1.442695
    %v1800 = vpow.pop %v1799
    %v1801 = vmul.f32 %v1734, 1.442695
    %v1802 = vpow.pop %v1801
    %v1803 = vmul.f32 %v1735, 1.442695
    %v1804 = vpow.pop %v1803
    %v1805 = vmul.f32 %v1736, 1.442695
    %v1806 = vpow.pop %v1805
    %v1807 = vmul.f32 %v1737, 1.442695
    %v1808 = vpow.pop %v1807
    %v1809 = vmul.f32 %v1738, 1.442695
    %v1810 = vpow.pop %v1809
    %v1811 = vmul.f32 %v1739, 1.442695
    %v1812 = vpow.pop %v1811
    %v1813 = vmul.f32 %v1740, 1.442695
    %v1814 = vpow.pop %v1813
    %v1815 = vmul.f32 %v1741, 1.442695
    %v1816 = vpow.pop %v1815
    %v1817 = vmul.f32 %v1742, 1.442695
    %v1818 = vpow.pop %v1817
    %v1819 = vmul.f32 %v1743, 1.442695
    %v1820 = vpow.pop %v1819
    %v1821 = vmul.f32 %v1744, 1.442695
    %v1822 = vpow.pop %v1821
    %v1823 = vmul.f32 %v1745, 1.442695
    %v1824 = vpow.pop %v1823
    %v1825 = vmul.f32 %v1746, 1.442695
    %v1826 = vpow.pop %v1825
    %v1827 = vmul.f32 %v1747, 1.442695
    %v1828 = vpow.pop %v1827
    %v1829 = vmul.f32 %v1748, 1.442695
    %v1830 = vpow.pop %v1829
    %v1831 = vmul.f32 %v1749, 1.442695
    %v1832 = vpow.pop %v1831
    %v1833 = vmul.f32 %v1750, 1.442695
    %v1834 = vpow.pop %v1833
    %v1835 = vmul.f32 %v1751, 1.442695
    %v1836 = vpow.pop %v1835
    %v1837 = vmul.f32 %v1752, 1.442695
    %v1838 = vpow.pop %v1837
    %v1839 = vmul.f32 %v1753, 1.442695
    %v1840 = vpow.pop %v1839
    %v1841 = vmul.f32 %v1754, 1.442695
    %v1842 = vpow.pop %v1841
    %v1843 = vmul.f32 %v1755, 1.442695
    %v1844 = vpow.pop %v1843
    %v1845 = vmul.f32 %v1756, 1.442695
    %v1846 = vpow.pop %v1845
    %v1847 = vmul.f32 %v1757, 1.442695
    %v1848 = vpow.pop %v1847
    %v1849 = vmul.f32 %v1758, 1.442695
    %v1850 = vpow.pop %v1849
    %v1851 = vmul.f32 %v1759, 1.442695
    %v1852 = vpow.pop %v1851
    %v1853 = vmul.f32 %v1760, 1.442695
    %v1854 = vpow.pop %v1853
    %v1855 = vmul.f32 %v1761, 1.442695
    %v1856 = vpow.pop %v1855
    %v1857 = vmul.f32 %v1762, 1.442695
    %v1858 = vpow.pop %v1857
    %v1859 = vmul.f32 %v1763, 1.442695
    %v1860 = vpow.pop %v1859
    %v1861 = vmul.f32 %v1764, 1.442695
    %v1862 = vpow.pop %v1861
    %v1863 = vmul.f32 %v1765, 1.442695
    %v1864 = vpow.pop %v1863
    %v1865 = vmul.f32 %v1766, 1.442695
    %v1866 = vpow.pop %v1865
    %v1867 = vmul.f32 %v1767, 1.442695
    %v1868 = vpow.pop %v1867
    %v1869 = vmul.f32 %v1768, 1.442695
    %v1870 = vpow.pop %v1869
    %v1871 = vmul.f32 %v1769, 1.442695
    %v1872 = vpow.pop %v1871
    %v1873 = vmul.f32 %v1770, 1.442695
    %v1874 = vpow.pop %v1873
    %v1875 = vmul.f32 %v1771, 1.442695
    %v1876 = vpow.pop %v1875
    %v1877 = vmul.f32 %v1772, 1.442695
    %v1878 = vpow.pop %v1877
    %v1879 = vmul.f32 %v1773, 1.442695
    %v1880 = vpow.pop %v1879
    %v1881 = vmul.f32 %v1774, 1.442695
    %v1882 = vpow.pop %v1881
    %v1883 = vmul.f32 %v1775, 1.442695
    %v1884 = vpow.pop %v1883
    %v1885 = vmul.f32 %v1776, 1.442695
    %v1886 = vpow.pop %v1885
    %v1887 = vmul.f32 %v1777, 1.442695
    %v1888 = vpow.pop %v1887
    %v1889 = vmul.f32 %v1778, 1.442695
    %v1890 = vpow.pop %v1889
    %v1891 = vmul.f32 %v1779, 1.442695
    %v1892 = vpow.pop %v1891
    %v1893 = vmul.f32 %v1780, 1.442695
    %v1894 = vpow.pop %v1893
    %v1895 = vmul.f32 %v1781, 1.442695
    %v1896 = vpow.pop %v1895
    %v1897 = vmul.f32 %v1782, 1.442695
    %v1898 = vpow.pop %v1897
    %v1899 = vmul.f32 %v1783, 1.442695
    %v1900 = vpow.pop %v1899
    %v1901 = vmul.f32 %v1784, 1.442695
    %v1902 = vpow.pop %v1901
    %v1903 = vmul.f32 %v1785, 1.442695
    %v1904 = vpow.pop %v1903
    %v1905 = vmul.f32 %v1786, 1.442695
    %v1906 = vpow.pop %v1905
    %v1907 = vmul.f32 %v1787, 1.442695
    %v1908 = vpow.pop %v1907
    %v1909 = vmul.f32 %v1788, 1.442695
    %v1910 = vpow.pop %v1909
    %v1911 = vmul.f32 %v1789, 1.442695
    %v1912 = vpow.pop %v1911
    %v1913 = vmul.f32 %v1790, 1.442695
    %v1914 = vpow.pop %v1913
    %v1915 = vmul.f32 %v1791, 1.442695
    %v1916 = vpow.pop %v1915
    %v1917 = vmul.f32 %v1792, 1.442695
    %v1918 = vpow.pop %v1917
    %v1919 = vmul.f32 %v1793, 1.442695
    %v1920 = vpow.pop %v1919
    %v1921 = vmul.f32 %v1794, 1.442695
    %v1922 = vpow.pop %v1921
    %1923 = vadd.xlane.f32.xlu0 %v1796
    %v1924 = vpop.xlane.xlu0 %1923
    %1925 = vadd.xlane.f32.xlu0 %v1798
    %v1926 = vpop.xlane.xlu0 %1925
    %1927 = vadd.xlane.f32.xlu0 %v1800
    %v1928 = vpop.xlane.xlu0 %1927
    %1929 = vadd.xlane.f32.xlu0 %v1802
    %v1930 = vpop.xlane.xlu0 %1929
    %1931 = vadd.xlane.f32.xlu0 %v1804
    %v1932 = vpop.xlane.xlu0 %1931
    %1933 = vadd.xlane.f32.xlu0 %v1806
    %v1934 = vpop.xlane.xlu0 %1933
    %1935 = vadd.xlane.f32.xlu0 %v1808
    %v1936 = vpop.xlane.xlu0 %1935
    %1937 = vadd.xlane.f32.xlu0 %v1810
    %v1938 = vpop.xlane.xlu0 %1937
    %1939 = vadd.xlane.f32.xlu0 %v1812
    %v1940 = vpop.xlane.xlu0 %1939
    %1941 = vadd.xlane.f32.xlu0 %v1814
    %v1942 = vpop.xlane.xlu0 %1941
    %1943 = vadd.xlane.f32.xlu0 %v1816
    %v1944 = vpop.xlane.xlu0 %1943
    %1945 = vadd.xlane.f32.xlu0 %v1818
    %v1946 = vpop.xlane.xlu0 %1945
    %1947 = vadd.xlane.f32.xlu0 %v1820
    %v1948 = vpop.xlane.xlu0 %1947
    %1949 = vadd.xlane.f32.xlu0 %v1822
    %v1950 = vpop.xlane.xlu0 %1949
    %1951 = vadd.xlane.f32.xlu0 %v1824
    %v1952 = vpop.xlane.xlu0 %1951
    %1953 = vadd.xlane.f32.xlu0 %v1826
    %v1954 = vpop.xlane.xlu0 %1953
    %1955 = vadd.xlane.f32.xlu0 %v1828
    %v1956 = vpop.xlane.xlu0 %1955
    %1957 = vadd.xlane.f32.xlu0 %v1830
    %v1958 = vpop.xlane.xlu0 %1957
    %1959 = vadd.xlane.f32.xlu0 %v1832
    %v1960 = vpop.xlane.xlu0 %1959
    %1961 = vadd.xlane.f32.xlu0 %v1834
    %v1962 = vpop.xlane.xlu0 %1961
    %1963 = vadd.xlane.f32.xlu0 %v1836
    %v1964 = vpop.xlane.xlu0 %1963
    %1965 = vadd.xlane.f32.xlu0 %v1838
    %v1966 = vpop.xlane.xlu0 %1965
    %1967 = vadd.xlane.f32.xlu0 %v1840
    %v1968 = vpop.xlane.xlu0 %1967
    %1969 = vadd.xlane.f32.xlu0 %v1842
    %v1970 = vpop.xlane.xlu0 %1969
    %1971 = vadd.xlane.f32.xlu0 %v1844
    %v1972 = vpop.xlane.xlu0 %1971
    %1973 = vadd.xlane.f32.xlu0 %v1846
    %v1974 = vpop.xlane.xlu0 %1973
    %1975 = vadd.xlane.f32.xlu0 %v1848
    %v1976 = vpop.xlane.xlu0 %1975
    %1977 = vadd.xlane.f32.xlu0 %v1850
    %v1978 = vpop.xlane.xlu0 %1977
    %1979 = vadd.xlane.f32.xlu0 %v1852
    %v1980 = vpop.xlane.xlu0 %1979
    %1981 = vadd.xlane.f32.xlu0 %v1854
    %v1982 = vpop.xlane.xlu0 %1981
    %1983 = vadd.xlane.f32.xlu0 %v1856
    %v1984 = vpop.xlane.xlu0 %1983
    %1985 = vadd.xlane.f32.xlu0 %v1858
    %v1986 = vpop.xlane.xlu0 %1985
    %1987 = vadd.xlane.f32.xlu0 %v1860
    %v1988 = vpop.xlane.xlu0 %1987
    %1989 = vadd.xlane.f32.xlu0 %v1862
    %v1990 = vpop.xlane.xlu0 %1989
    %1991 = vadd.xlane.f32.xlu0 %v1864
    %v1992 = vpop.xlane.xlu0 %1991
    %1993 = vadd.xlane.f32.xlu0 %v1866
    %v1994 = vpop.xlane.xlu0 %1993
    %1995 = vadd.xlane.f32.xlu0 %v1868
    %v1996 = vpop.xlane.xlu0 %1995
    %1997 = vadd.xlane.f32.xlu0 %v1870
    %v1998 = vpop.xlane.xlu0 %1997
    %1999 = vadd.xlane.f32.xlu0 %v1872
    %v2000 = vpop.xlane.xlu0 %1999
    %2001 = vadd.xlane.f32.xlu0 %v1874
    %v2002 = vpop.xlane.xlu0 %2001
    %2003 = vadd.xlane.f32.xlu0 %v1876
    %v2004 = vpop.xlane.xlu0 %2003
    %2005 = vadd.xlane.f32.xlu0 %v1878
    %v2006 = vpop.xlane.xlu0 %2005
    %2007 = vadd.xlane.f32.xlu0 %v1880
    %v2008 = vpop.xlane.xlu0 %2007
    %2009 = vadd.xlane.f32.xlu0 %v1882
    %v2010 = vpop.xlane.xlu0 %2009
    %2011 = vadd.xlane.f32.xlu0 %v1884
    %v2012 = vpop.xlane.xlu0 %2011
    %2013 = vadd.xlane.f32.xlu0 %v1886
    %v2014 = vpop.xlane.xlu0 %2013
    %2015 = vadd.xlane.f32.xlu0 %v1888
    %v2016 = vpop.xlane.xlu0 %2015
    %2017 = vadd.xlane.f32.xlu0 %v1890
    %v2018 = vpop.xlane.xlu0 %2017
    %2019 = vadd.xlane.f32.xlu0 %v1892
    %v2020 = vpop.xlane.xlu0 %2019
    %2021 = vadd.xlane.f32.xlu0 %v1894
    %v2022 = vpop.xlane.xlu0 %2021
    %2023 = vadd.xlane.f32.xlu0 %v1896
    %v2024 = vpop.xlane.xlu0 %2023
    %2025 = vadd.xlane.f32.xlu0 %v1898
    %v2026 = vpop.xlane.xlu0 %2025
    %2027 = vadd.xlane.f32.xlu0 %v1900
    %v2028 = vpop.xlane.xlu0 %2027
    %2029 = vadd.xlane.f32.xlu0 %v1902
    %v2030 = vpop.xlane.xlu0 %2029
    %2031 = vadd.xlane.f32.xlu0 %v1904
    %v2032 = vpop.xlane.xlu0 %2031
    %2033 = vadd.xlane.f32.xlu0 %v1906
    %v2034 = vpop.xlane.xlu0 %2033
    %2035 = vadd.xlane.f32.xlu0 %v1908
    %v2036 = vpop.xlane.xlu0 %2035
    %2037 = vadd.xlane.f32.xlu0 %v1910
    %v2038 = vpop.xlane.xlu0 %2037
    %2039 = vadd.xlane.f32.xlu0 %v1912
    %v2040 = vpop.xlane.xlu0 %2039
    %2041 = vadd.xlane.f32.xlu0 %v1914
    %v2042 = vpop.xlane.xlu0 %2041
    %2043 = vadd.xlane.f32.xlu0 %v1916
    %v2044 = vpop.xlane.xlu0 %2043
    %2045 = vadd.xlane.f32.xlu0 %v1918
    %v2046 = vpop.xlane.xlu0 %2045
    %2047 = vadd.xlane.f32.xlu0 %v1920
    %v2048 = vpop.xlane.xlu0 %2047
    %2049 = vadd.xlane.f32.xlu0 %v1922
    %v2050 = vpop.xlane.xlu0 %2049
    %v2051 = vrcp.pop %v1924
    %v2052 = vrcp.pop %v1926
    %v2053 = vrcp.pop %v1928
    %v2054 = vrcp.pop %v1930
    %v2055 = vrcp.pop %v1932
    %v2056 = vrcp.pop %v1934
    %v2057 = vrcp.pop %v1936
    %v2058 = vrcp.pop %v1938
    %v2059 = vrcp.pop %v1940
    %v2060 = vrcp.pop %v1942
    %v2061 = vrcp.pop %v1944
    %v2062 = vrcp.pop %v1946
    %v2063 = vrcp.pop %v1948
    %v2064 = vrcp.pop %v1950
    %v2065 = vrcp.pop %v1952
    %v2066 = vrcp.pop %v1954
    %v2067 = vrcp.pop %v1956
    %v2068 = vrcp.pop %v1958
    %v2069 = vrcp.pop %v1960
    %v2070 = vrcp.pop %v1962
    %v2071 = vrcp.pop %v1964
    %v2072 = vrcp.pop %v1966
    %v2073 = vrcp.pop %v1968
    %v2074 = vrcp.pop %v1970
    %v2075 = vrcp.pop %v1972
    %v2076 = vrcp.pop %v1974
    %v2077 = vrcp.pop %v1976
    %v2078 = vrcp.pop %v1978
    %v2079 = vrcp.pop %v1980
    %v2080 = vrcp.pop %v1982
    %v2081 = vrcp.pop %v1984
    %v2082 = vrcp.pop %v1986
    %v2083 = vrcp.pop %v1988
    %v2084 = vrcp.pop %v1990
    %v2085 = vrcp.pop %v1992
    %v2086 = vrcp.pop %v1994
    %v2087 = vrcp.pop %v1996
    %v2088 = vrcp.pop %v1998
    %v2089 = vrcp.pop %v2000
    %v2090 = vrcp.pop %v2002
    %v2091 = vrcp.pop %v2004
    %v2092 = vrcp.pop %v2006
    %v2093 = vrcp.pop %v2008
    %v2094 = vrcp.pop %v2010
    %v2095 = vrcp.pop %v2012
    %v2096 = vrcp.pop %v2014
    %v2097 = vrcp.pop %v2016
    %v2098 = vrcp.pop %v2018
    %v2099 = vrcp.pop %v2020
    %v2100 = vrcp.pop %v2022
    %v2101 = vrcp.pop %v2024
    %v2102 = vrcp.pop %v2026
    %v2103 = vrcp.pop %v2028
    %v2104 = vrcp.pop %v2030
    %v2105 = vrcp.pop %v2032
    %v2106 = vrcp.pop %v2034
    %v2107 = vrcp.pop %v2036
    %v2108 = vrcp.pop %v2038
    %v2109 = vrcp.pop %v2040
    %v2110 = vrcp.pop %v2042
    %v2111 = vrcp.pop %v2044
    %v2112 = vrcp.pop %v2046
    %v2113 = vrcp.pop %v2048
    %v2114 = vrcp.pop %v2050
    %v2115 = vmul.f32 %v1796, %v2051
    %v2116 = vmul.f32 %v1798, %v2052
    %v2117 = vmul.f32 %v1800, %v2053
    %v2118 = vmul.f32 %v1802, %v2054
    %v2119 = vmul.f32 %v1804, %v2055
    %v2120 = vmul.f32 %v1806, %v2056
    %v2121 = vmul.f32 %v1808, %v2057
    %v2122 = vmul.f32 %v1810, %v2058
    %v2123 = vmul.f32 %v1812, %v2059
    %v2124 = vmul.f32 %v1814, %v2060
    %v2125 = vmul.f32 %v1816, %v2061
    %v2126 = vmul.f32 %v1818, %v2062
    %v2127 = vmul.f32 %v1820, %v2063
    %v2128 = vmul.f32 %v1822, %v2064
    %v2129 = vmul.f32 %v1824, %v2065
    %v2130 = vmul.f32 %v1826, %v2066
    %v2131 = vmul.f32 %v1828, %v2067
    %v2132 = vmul.f32 %v1830, %v2068
    %v2133 = vmul.f32 %v1832, %v2069
    %v2134 = vmul.f32 %v1834, %v2070
    %v2135 = vmul.f32 %v1836, %v2071
    %v2136 = vmul.f32 %v1838, %v2072
    %v2137 = vmul.f32 %v1840, %v2073
    %v2138 = vmul.f32 %v1842, %v2074
    %v2139 = vmul.f32 %v1844, %v2075
    %v2140 = vmul.f32 %v1846, %v2076
    %v2141 = vmul.f32 %v1848, %v2077
    %v2142 = vmul.f32 %v1850, %v2078
    %v2143 = vmul.f32 %v1852, %v2079
    %v2144 = vmul.f32 %v1854, %v2080
    %v2145 = vmul.f32 %v1856, %v2081
    %v2146 = vmul.f32 %v1858, %v2082
    %v2147 = vmul.f32 %v1860, %v2083
    %v2148 = vmul.f32 %v1862, %v2084
    %v2149 = vmul.f32 %v1864, %v2085
    %v2150 = vmul.f32 %v1866, %v2086
    %v2151 = vmul.f32 %v1868, %v2087
    %v2152 = vmul.f32 %v1870, %v2088
    %v2153 = vmul.f32 %v1872, %v2089
    %v2154 = vmul.f32 %v1874, %v2090
    %v2155 = vmul.f32 %v1876, %v2091
    %v2156 = vmul.f32 %v1878, %v2092
    %v2157 = vmul.f32 %v1880, %v2093
    %v2158 = vmul.f32 %v1882, %v2094
    %v2159 = vmul.f32 %v1884, %v2095
    %v2160 = vmul.f32 %v1886, %v2096
    %v2161 = vmul.f32 %v1888, %v2097
    %v2162 = vmul.f32 %v1890, %v2098
    %v2163 = vmul.f32 %v1892, %v2099
    %v2164 = vmul.f32 %v1894, %v2100
    %v2165 = vmul.f32 %v1896, %v2101
    %v2166 = vmul.f32 %v1898, %v2102
    %v2167 = vmul.f32 %v1900, %v2103
    %v2168 = vmul.f32 %v1902, %v2104
    %v2169 = vmul.f32 %v1904, %v2105
    %v2170 = vmul.f32 %v1906, %v2106
    %v2171 = vmul.f32 %v1908, %v2107
    %v2172 = vmul.f32 %v1910, %v2108
    %v2173 = vmul.f32 %v1912, %v2109
    %v2174 = vmul.f32 %v1914, %v2110
    %v2175 = vmul.f32 %v1916, %v2111
    %v2176 = vmul.f32 %v1918, %v2112
    %v2177 = vmul.f32 %v1920, %v2113
    %v2178 = vmul.f32 %v1922, %v2114
    %2179 = vst [vmem:[#allocation2] sm:$0xff] %v2115
    %2180 = vst [vmem:[#allocation2 + $0x8] sm:$0xff] %v2116
    %2181 = vst [vmem:[#allocation2 + $0x10] sm:$0xff] %v2117
    %2182 = vst [vmem:[#allocation2 + $0x18] sm:$0xff] %v2118
    %2183 = vst [vmem:[#allocation2 + $0x20] sm:$0xff] %v2119
    %2184 = vst [vmem:[#allocation2 + $0x28] sm:$0xff] %v2120
    %2185 = vst [vmem:[#allocation2 + $0x30] sm:$0xff] %v2121
    %2186 = vst [vmem:[#allocation2 + $0x38] sm:$0xff] %v2122
    %2187 = vst [vmem:[#allocation2 + $0x40] sm:$0xff] %v2123
    %2188 = vst [vmem:[#allocation2 + $0x48] sm:$0xff] %v2124
    %2189 = vst [vmem:[#allocation2 + $0x50] sm:$0xff] %v2125
    %2190 = vst [vmem:[#allocation2 + $0x58] sm:$0xff] %v2126
    %2191 = vst [vmem:[#allocation2 + $0x60] sm:$0xff] %v2127
    %2192 = vst [vmem:[#allocation2 + $0x68] sm:$0xff] %v2128
    %2193 = vst [vmem:[#allocation2 + $0x70] sm:$0xff] %v2129
    %2194 = vst [vmem:[#allocation2 + $0x78] sm:$0xff] %v2130
    %2195 = vst [vmem:[#allocation2 + $0x80] sm:$0xff] %v2131
    %2196 = vst [vmem:[#allocation2 + $0x88] sm:$0xff] %v2132
    %2197 = vst [vmem:[#allocation2 + $0x90] sm:$0xff] %v2133
    %2198 = vst [vmem:[#allocation2 + $0x98] sm:$0xff] %v2134
    %2199 = vst [vmem:[#allocation2 + $0xa0] sm:$0xff] %v2135
    %2200 = vst [vmem:[#allocation2 + $0xa8] sm:$0xff] %v2136
    %2201 = vst [vmem:[#allocation2 + $0xb0] sm:$0xff] %v2137
    %2202 = vst [vmem:[#allocation2 + $0xb8] sm:$0xff] %v2138
    %2203 = vst [vmem:[#allocation2 + $0xc0] sm:$0xff] %v2139
    %2204 = vst [vmem:[#allocation2 + $0xc8] sm:$0xff] %v2140
    %2205 = vst [vmem:[#allocation2 + $0xd0] sm:$0xff] %v2141
    %2206 = vst [vmem:[#allocation2 + $0xd8] sm:$0xff] %v2142
    %2207 = vst [vmem:[#allocation2 + $0xe0] sm:$0xff] %v2143
    %2208 = vst [vmem:[#allocation2 + $0xe8] sm:$0xff] %v2144
    %2209 = vst [vmem:[#allocation2 + $0xf0] sm:$0xff] %v2145
    %2210 = vst [vmem:[#allocation2 + $0xf8] sm:$0xff] %v2146
    %2211 = vst [vmem:[#allocation2 + $0x100] sm:$0xff] %v2147
    %2212 = vst [vmem:[#allocation2 + $0x108] sm:$0xff] %v2148
    %2213 = vst [vmem:[#allocation2 + $0x110] sm:$0xff] %v2149
    %2214 = vst [vmem:[#allocation2 + $0x118] sm:$0xff] %v2150
    %2215 = vst [vmem:[#allocation2 + $0x120] sm:$0xff] %v2151
    %2216 = vst [vmem:[#allocation2 + $0x128] sm:$0xff] %v2152
    %2217 = vst [vmem:[#allocation2 + $0x130] sm:$0xff] %v2153
    %2218 = vst [vmem:[#allocation2 + $0x138] sm:$0xff] %v2154
    %2219 = vst [vmem:[#allocation2 + $0x140] sm:$0xff] %v2155
    %2220 = vst [vmem:[#allocation2 + $0x148] sm:$0xff] %v2156
    %2221 = vst [vmem:[#allocation2 + $0x150] sm:$0xff] %v2157
    %2222 = vst [vmem:[#allocation2 + $0x158] sm:$0xff] %v2158
    %2223 = vst [vmem:[#allocation2 + $0x160] sm:$0xff] %v2159
    %2224 = vst [vmem:[#allocation2 + $0x168] sm:$0xff] %v2160
    %2225 = vst [vmem:[#allocation2 + $0x170] sm:$0xff] %v2161
    %2226 = vst [vmem:[#allocation2 + $0x178] sm:$0xff] %v2162
    %2227 = vst [vmem:[#allocation2 + $0x180] sm:$0xff] %v2163
    %2228 = vst [vmem:[#allocation2 + $0x188] sm:$0xff] %v2164
    %2229 = vst [vmem:[#allocation2 + $0x190] sm:$0xff] %v2165
    %2230 = vst [vmem:[#allocation2 + $0x198] sm:$0xff] %v2166
    %2231 = vst [vmem:[#allocation2 + $0x1a0] sm:$0xff] %v2167
    %2232 = vst [vmem:[#allocation2 + $0x1a8] sm:$0xff] %v2168
    %2233 = vst [vmem:[#allocation2 + $0x1b0] sm:$0xff] %v2169
    %2234 = vst [vmem:[#allocation2 + $0x1b8] sm:$0xff] %v2170
    %2235 = vst [vmem:[#allocation2 + $0x1c0] sm:$0xff] %v2171
    %2236 = vst [vmem:[#allocation2 + $0x1c8] sm:$0xff] %v2172
    %2237 = vst [vmem:[#allocation2 + $0x1d0] sm:$0xff] %v2173
    %2238 = vst [vmem:[#allocation2 + $0x1d8] sm:$0xff] %v2174
    %2239 = vst [vmem:[#allocation2 + $0x1e0] sm:$0xff] %v2175
    %2240 = vst [vmem:[#allocation2 + $0x1e8] sm:$0xff] %v2176
    %2241 = vst [vmem:[#allocation2 + $0x1f0] sm:$0xff] %v2177
    %2242 = vst [vmem:[#allocation2 + $0x1f8] sm:$0xff] %v2178
    // Predicated region
    $region10: #{tpu_custom_call.1} parent=1 // pred_check
      _
    $region11: #{tpu_custom_call.1} parent=1 // pred_check_branch
      %2244 = sbr.rel (0) target = $region13
    $region12: #{tpu_custom_call.1} parent=1 // pred_region
      %s2246 = ssub.s32 8192, 8192
      %2247 = vsyncadd [#allocation3], %s2246
      %s2248 = sshll.u32 [#allocation2], 4
      %s2249 = int_to_ptr.vmem [resolvable:$true] %s2248
      %2254 = dma.vmem_to_hbm [thread:$0]  %s2249, 8192, %s2, [#allocation3], 128, 128, 8
    $region13: #{tpu_custom_call.1} parent=1 // pred_fallthru
      _
    // Predicated region
    $region14: #{tpu_custom_call.1} parent=1 // pred_check
      _
    $region15: #{tpu_custom_call.1} parent=1 // pred_check_branch
      %2256 = sbr.rel (0) target = $region17
    $region16: #{tpu_custom_call.1} parent=1 // pred_region
      %2257 = dma.done [#allocation3], 8192
    $region17: #{tpu_custom_call.1} parent=1 // pred_fallthru
      _
    %2258 = vsyncpa [#allocation3], 1

</llo_original>
